<compile_context>
chip_gen: v7x
topology: tpu7x:2x2x1
jax: 0.10.0
libtpu: 0.0.40
codegen_flags: <defaults>
</compile_context>

<pallas_src>
import math
import functools

import jax
import jax.numpy as jnp
from jax.experimental import pallas as pl
from jax.experimental.pallas import tpu as pltpu


def transformer_block_kernel(
    x_ref, wq_ref, wk_ref, wv_ref, wo_ref,
    w1_ref, w2_ref, w3_ref,
    attn_norm_ref, ffn_norm_ref,
    cos_ref, sin_ref,
    out_ref,
    *, n_heads, head_dim, eps,
):
    x = x_ref[0]                                   # (S, D) f32
    S, D = x.shape
    half = head_dim // 2

    def rmsnorm(v, w):                             # w is (1, D); all f32 (VPU)
        ms = jnp.mean(v * v, axis=-1, keepdims=True)
        return v * (jax.lax.rsqrt(ms + eps) * w)

    # ---- attention branch -------------------------------------------------
    xn = rmsnorm(x, attn_norm_ref[...])
    xn_b = xn.astype(jnp.bfloat16)

    # wq/wk columns were permuted on the host to per-head [even | odd] layout.
    q = jnp.dot(xn_b, wq_ref[...], preferred_element_type=jnp.float32)
    k = jnp.dot(xn_b, wk_ref[...], preferred_element_type=jnp.float32)
    v = jnp.dot(xn_b, wv_ref[...], preferred_element_type=jnp.float32)
    v_b = v.astype(jnp.bfloat16)

    cos = cos_ref[...]                             # (S, head_dim//2) f32
    sin = sin_ref[...]
    scale = 1.0 / math.sqrt(head_dim)

    # causal mask from iota: no (S,S) tensor DMA'd from HBM
    row = jax.lax.broadcasted_iota(jnp.int32, (S, S), 0)
    col = jax.lax.broadcasted_iota(jnp.int32, (S, S), 1)
    causal = col <= row
    neg_inf = jnp.float32(-jnp.inf)

    # NOTE: n_heads is tiny here, so a static unroll is fine; for production
    # head counts batch heads into one einsum over an (H, S, hd) view instead.
    head_outs = []
    for h in range(n_heads):
        sl = slice(h * head_dim, (h + 1) * head_dim)
        qh = q[:, sl]                              # (S, hd) f32, [even|odd]
        kh = k[:, sl]
        vh = v_b[:, sl]                            # original ordering (not rotated)

        qe, qo = qh[:, :half], qh[:, half:]
        ke, ko = kh[:, :half], kh[:, half:]
        # half-rotary rotation on the permuted layout == interleaved RoPE on
        # the original layout up to a per-head permutation shared by q and k.
        qh_rot = jnp.concatenate(
            [qe * cos - qo * sin, qo * cos + qe * sin], axis=-1) * scale
        kh_rot = jnp.concatenate(
            [ke * cos - ko * sin, ko * cos + ke * sin], axis=-1)

        # scores = (q / sqrt(hd)) @ k^T, bf16 inputs, f32 accumulation
        s = jax.lax.dot_general(
            qh_rot.astype(jnp.bfloat16), kh_rot.astype(jnp.bfloat16),
            (((1,), (1,)), ((), ())),
            preferred_element_type=jnp.float32)
        s = jnp.where(causal, s, neg_inf)

        m = jnp.max(s, axis=-1, keepdims=True)
        p = jnp.exp(s - m)                                           # f32
        inv = pl.reciprocal(jnp.sum(p, axis=-1, keepdims=True), approx=True)
        p = (p * inv).astype(jnp.bfloat16)

        head_outs.append(jnp.dot(p, vh, preferred_element_type=jnp.float32))

    attn = jnp.concatenate(head_outs, axis=-1)     # (S, D) lane-dense, in vregs

    attn_out = jnp.dot(attn.astype(jnp.bfloat16), wo_ref[...],
                       preferred_element_type=jnp.float32)
    h1 = x + attn_out                              # first residual (f32)

    # ---- feed-forward branch (SwiGLU) --------------------------------------
    hn = rmsnorm(h1, ffn_norm_ref[...])
    hn_b = hn.astype(jnp.bfloat16)
    g = jnp.dot(hn_b, w1_ref[...], preferred_element_type=jnp.float32)
    u = jnp.dot(hn_b, w3_ref[...], preferred_element_type=jnp.float32)
    act = (g * jax.nn.sigmoid(g)) * u              # SiLU * gate, f32 elementwise
    ffn = jnp.dot(act.astype(jnp.bfloat16), w2_ref[...],
                  preferred_element_type=jnp.float32)

    out_ref[0] = h1 + ffn                          # second residual


def _deinterleave_perm(n_heads, head_dim):
    """Per-head column permutation: [0,2,4,...,hd-2, 1,3,...,hd-1]."""
    idx = []
    for h in range(n_heads):
        base = h * head_dim
        idx.extend(base + j for j in range(0, head_dim, 2))
        idx.extend(base + j for j in range(1, head_dim, 2))
    return jnp.array(idx, dtype=jnp.int32)


def transformer_block(x, params, cos_half, sin_half, *, n_heads, head_dim,
                      eps=1e-5):
    B, S, D = x.shape
    H = params["w1"].shape[1]
    bf16 = jnp.bfloat16

    # Host-side: permute wq/wk columns into the de-interleaved per-head layout
    # and cast all weights to bf16 (halves HBM->VMEM traffic).
    perm = _deinterleave_perm(n_heads, head_dim)
    wq = params["wq"][:, perm].astype(bf16)
    wk = params["wk"][:, perm].astype(bf16)
    wv = params["wv"].astype(bf16)
    wo = params["wo"].astype(bf16)
    w1 = params["w1"].astype(bf16)
    w2 = params["w2"].astype(bf16)
    w3 = params["w3"].astype(bf16)

    full2d = lambda shape: pl.BlockSpec(shape, lambda b: (0, 0))

    kernel = functools.partial(
        transformer_block_kernel, n_heads=n_heads, head_dim=head_dim, eps=eps)

    out = pl.pallas_call(
        kernel,
        out_shape=jax.ShapeDtypeStruct((B, S, D), jnp.float32),
        grid_spec=pltpu.PrefetchScalarGridSpec(
            num_scalar_prefetch=0,
            grid=(B,),
            in_specs=[
                pl.BlockSpec((1, S, D), lambda b: (b, 0, 0)),   # x
                full2d((D, D)),                                 # wq (bf16, permuted)
                full2d((D, D)),                                 # wk (bf16, permuted)
                full2d((D, D)),                                 # wv (bf16)
                full2d((D, D)),                                 # wo (bf16)
                full2d((D, H)),                                 # w1 (bf16)
                full2d((H, D)),                                 # w2 (bf16)
                full2d((D, H)),                                 # w3 (bf16)
                full2d((1, D)),                                 # attention_norm (f32)
                full2d((1, D)),                                 # ffn_norm (f32)
                full2d((S, head_dim // 2)),                     # cos (S, hd/2)
                full2d((S, head_dim // 2)),                     # sin (S, hd/2)
            ],
            out_specs=pl.BlockSpec((1, S, D), lambda b: (b, 0, 0)),
        ),
        compiler_params=pltpu.CompilerParams(
            dimension_semantics=("parallel",)),
    )(x, wq, wk, wv, wo, w1, w2, w3,
      params["attention_norm"], params["ffn_norm"],
      cos_half, sin_half)

    # The PyTorch module returns (out, out) when 'output_attentions' is not
    # in att_type.
    return out, out


def make_rope_tables(seq_len, head_dim, theta=10000.0):
    """cos/sin tables of shape (S, head_dim//2), shared across heads."""
    freqs = 1.0 / (theta ** (jnp.arange(0, head_dim, 2, dtype=jnp.float32)
                             / head_dim))                       # (hd/2,)
    pos = jnp.arange(seq_len, dtype=jnp.float32)
    ang = pos[:, None] * freqs[None, :]                         # (S, hd/2)
    return jnp.cos(ang), jnp.sin(ang)


if __name__ == "__main__":
    # Small, consistent shapes: dim=64, n_heads=4 -> head_dim=16,
    # multiple_of=32 -> ffn hidden = 32*ceil(int(2*4*64/3)/32) = 192.
    B, S, D = 2, 8, 64
    n_heads, head_dim = 4, 16
    hidden = int(2 * (4 * D) / 3)
    multiple_of = 32
    hidden = multiple_of * ((hidden + multiple_of - 1) // multiple_of)  # 192

    key = jax.random.PRNGKey(0)
    keys = jax.random.split(key, 10)
    scale = 0.05
    params = {
        "wq": scale * jax.random.normal(keys[0], (D, D), jnp.float32),
        "wk": scale * jax.random.normal(keys[1], (D, D), jnp.float32),
        "wv": scale * jax.random.normal(keys[2], (D, D), jnp.float32),
        "wo": scale * jax.random.normal(keys[3], (D, D), jnp.float32),
        "w1": scale * jax.random.normal(keys[4], (D, hidden), jnp.float32),
        "w2": scale * jax.random.normal(keys[5], (hidden, D), jnp.float32),
        "w3": scale * jax.random.normal(keys[6], (D, hidden), jnp.float32),
        "attention_norm": jnp.ones((1, D), jnp.float32),
        "ffn_norm": jnp.ones((1, D), jnp.float32),
    }

    x = jax.random.normal(keys[7], (B, S, D), jnp.float32)

    cos_half, sin_half = make_rope_tables(S, head_dim)

    out, _ = transformer_block(x, params, cos_half, sin_half,
                               n_heads=n_heads, head_dim=head_dim, eps=1e-5)
    out = jax.block_until_ready(out)

    assert out.shape == (B, S, D)
    assert bool(jnp.all(jnp.isfinite(out)))
    print("KERNEL_OK")
</pallas_src>

<mosaic_0001>
module attributes {stable_mosaic.version = 11 : i64} {
  func.func @transformer_block_kernel(%arg0: i32, %arg1: memref<1x8x64xf32, #tpu.memory_space<vmem>>, %arg2: memref<64x64xbf16, #tpu.memory_space<vmem>>, %arg3: memref<64x64xbf16, #tpu.memory_space<vmem>>, %arg4: memref<64x64xbf16, #tpu.memory_space<vmem>>, %arg5: memref<64x64xbf16, #tpu.memory_space<vmem>>, %arg6: memref<64x192xbf16, #tpu.memory_space<vmem>>, %arg7: memref<192x64xbf16, #tpu.memory_space<vmem>>, %arg8: memref<64x192xbf16, #tpu.memory_space<vmem>>, %arg9: memref<1x64xf32, #tpu.memory_space<vmem>>, %arg10: memref<1x64xf32, #tpu.memory_space<vmem>>, %arg11: memref<8x8xf32, #tpu.memory_space<vmem>>, %arg12: memref<8x8xf32, #tpu.memory_space<vmem>>, %arg13: memref<1x8x64xf32, #tpu.memory_space<vmem>>) attributes {dimension_semantics = [#tpu.dimension_semantics<parallel>], iteration_bounds = array<i64: 2>, scalar_prefetch = 0 : i64, scratch_operands = 0 : i64, tpu.core_type = #tpu.core_type<tc>, window_params = [{transform_indices = @transform_0, window_bounds = array<i64: 1, 8, 64>}, {pipeline_mode = #tpu.pipeline_mode<synchronous>, transform_indices = @transform_1, window_bounds = array<i64: 64, 64>}, {pipeline_mode = #tpu.pipeline_mode<synchronous>, transform_indices = @transform_2, window_bounds = array<i64: 64, 64>}, {pipeline_mode = #tpu.pipeline_mode<synchronous>, transform_indices = @transform_3, window_bounds = array<i64: 64, 64>}, {pipeline_mode = #tpu.pipeline_mode<synchronous>, transform_indices = @transform_4, window_bounds = array<i64: 64, 64>}, {pipeline_mode = #tpu.pipeline_mode<synchronous>, transform_indices = @transform_5, window_bounds = array<i64: 64, 192>}, {pipeline_mode = #tpu.pipeline_mode<synchronous>, transform_indices = @transform_6, window_bounds = array<i64: 192, 64>}, {pipeline_mode = #tpu.pipeline_mode<synchronous>, transform_indices = @transform_7, window_bounds = array<i64: 64, 192>}, {pipeline_mode = #tpu.pipeline_mode<synchronous>, transform_indices = @transform_8, window_bounds = array<i64: 1, 64>}, {pipeline_mode = #tpu.pipeline_mode<synchronous>, transform_indices = @transform_9, window_bounds = array<i64: 1, 64>}, {pipeline_mode = #tpu.pipeline_mode<synchronous>, transform_indices = @transform_10, window_bounds = array<i64: 8, 8>}, {pipeline_mode = #tpu.pipeline_mode<synchronous>, transform_indices = @transform_11, window_bounds = array<i64: 8, 8>}, {transform_indices = @transform_12, window_bounds = array<i64: 1, 8, 64>}]} {
    %c0 = arith.constant 0 : index
    %c0_0 = arith.constant 0 : index
    %c0_1 = arith.constant 0 : index
    %0 = vector.load %arg1[%c0, %c0_0, %c0_1] : memref<1x8x64xf32, #tpu.memory_space<vmem>>, vector<1x8x64xf32>
    %1 = vector.shape_cast %0 : vector<1x8x64xf32> to vector<8x64xf32>
    %c0_2 = arith.constant 0 : index
    %c0_3 = arith.constant 0 : index
    %2 = vector.load %arg9[%c0_2, %c0_3] : memref<1x64xf32, #tpu.memory_space<vmem>>, vector<1x64xf32>
    %3 = arith.mulf %1, %1 : vector<8x64xf32>
    %cst = arith.constant dense<0.000000e+00> : vector<8xf32>
    %4 = vector.multi_reduction <add>, %3, %cst [1] : vector<8x64xf32> to vector<8xf32>
    %5 = vector.shape_cast %4 : vector<8xf32> to vector<8x1xf32>
    %cst_4 = arith.constant 6.400000e+01 : f32
    %6 = vector.broadcast %cst_4 : f32 to vector<8x1xf32>
    %7 = arith.divf %5, %6 : vector<8x1xf32>
    %cst_5 = arith.constant 9.99999974E-6 : f32
    %8 = vector.broadcast %cst_5 : f32 to vector<8x1xf32>
    %9 = arith.addf %7, %8 : vector<8x1xf32>
    %10 = math.rsqrt %9 : vector<8x1xf32>
    %11 = vector.broadcast %10 : vector<8x1xf32> to vector<8x64xf32>
    %12 = vector.broadcast %2 : vector<1x64xf32> to vector<8x64xf32>
    %13 = arith.mulf %11, %12 : vector<8x64xf32>
    %14 = arith.mulf %1, %13 : vector<8x64xf32>
    %15 = arith.truncf %14 : vector<8x64xf32> to vector<8x64xbf16>
    %c0_6 = arith.constant 0 : index
    %c0_7 = arith.constant 0 : index
    %16 = vector.load %arg2[%c0_6, %c0_7] : memref<64x64xbf16, #tpu.memory_space<vmem>>, vector<64x64xbf16>
    %cst_8 = arith.constant dense<0.000000e+00> : vector<8x64xf32>
    %17 = tpu.matmul %15, %16, %cst_8 {dimension_numbers = #tpu.dot_dimension_numbers<[1], [0], [0], [1], [0, 0, 1, 1], [], []>} : vector<8x64xbf16>, vector<64x64xbf16>, vector<8x64xf32> -> vector<8x64xf32>
    %c0_9 = arith.constant 0 : index
    %c0_10 = arith.constant 0 : index
    %18 = vector.load %arg3[%c0_9, %c0_10] : memref<64x64xbf16, #tpu.memory_space<vmem>>, vector<64x64xbf16>
    %cst_11 = arith.constant dense<0.000000e+00> : vector<8x64xf32>
    %19 = tpu.matmul %15, %18, %cst_11 {dimension_numbers = #tpu.dot_dimension_numbers<[1], [0], [0], [1], [0, 0, 1, 1], [], []>} : vector<8x64xbf16>, vector<64x64xbf16>, vector<8x64xf32> -> vector<8x64xf32>
    %c0_12 = arith.constant 0 : index
    %c0_13 = arith.constant 0 : index
    %20 = vector.load %arg4[%c0_12, %c0_13] : memref<64x64xbf16, #tpu.memory_space<vmem>>, vector<64x64xbf16>
    %cst_14 = arith.constant dense<0.000000e+00> : vector<8x64xf32>
    %21 = tpu.matmul %15, %20, %cst_14 {dimension_numbers = #tpu.dot_dimension_numbers<[1], [0], [0], [1], [0, 0, 1, 1], [], []>} : vector<8x64xbf16>, vector<64x64xbf16>, vector<8x64xf32> -> vector<8x64xf32>
    %22 = arith.truncf %21 : vector<8x64xf32> to vector<8x64xbf16>
    %c0_15 = arith.constant 0 : index
    %c0_16 = arith.constant 0 : index
    %23 = vector.load %arg11[%c0_15, %c0_16] : memref<8x8xf32, #tpu.memory_space<vmem>>, vector<8x8xf32>
    %c0_17 = arith.constant 0 : index
    %c0_18 = arith.constant 0 : index
    %24 = vector.load %arg12[%c0_17, %c0_18] : memref<8x8xf32, #tpu.memory_space<vmem>>, vector<8x8xf32>
    %25 = tpu.iota {dimensions = array<i32: 0>} : vector<8x8xi32>
    %26 = tpu.iota {dimensions = array<i32: 1>} : vector<8x8xi32>
    %27 = arith.cmpi sle, %26, %25 : vector<8x8xi32>
    %28 = vector.extract_strided_slice %17 {offsets = [0, 0], sizes = [8, 16], strides = [1, 1]} : vector<8x64xf32> to vector<8x16xf32>
    %29 = vector.extract_strided_slice %19 {offsets = [0, 0], sizes = [8, 16], strides = [1, 1]} : vector<8x64xf32> to vector<8x16xf32>
    %30 = vector.extract_strided_slice %22 {offsets = [0, 0], sizes = [8, 16], strides = [1, 1]} : vector<8x64xbf16> to vector<8x16xbf16>
    %31 = vector.extract_strided_slice %28 {offsets = [0, 0], sizes = [8, 8], strides = [1, 1]} : vector<8x16xf32> to vector<8x8xf32>
    %32 = vector.extract_strided_slice %28 {offsets = [0, 8], sizes = [8, 8], strides = [1, 1]} : vector<8x16xf32> to vector<8x8xf32>
    %33 = vector.extract_strided_slice %29 {offsets = [0, 0], sizes = [8, 8], strides = [1, 1]} : vector<8x16xf32> to vector<8x8xf32>
    %34 = vector.extract_strided_slice %29 {offsets = [0, 8], sizes = [8, 8], strides = [1, 1]} : vector<8x16xf32> to vector<8x8xf32>
    %35 = arith.mulf %31, %23 : vector<8x8xf32>
    %36 = arith.mulf %32, %24 : vector<8x8xf32>
    %37 = arith.subf %35, %36 : vector<8x8xf32>
    %38 = arith.mulf %32, %23 : vector<8x8xf32>
    %39 = arith.mulf %31, %24 : vector<8x8xf32>
    %40 = arith.addf %38, %39 : vector<8x8xf32>
    %41 = tpu.concatenate %37, %40 in 1 : vector<8x8xf32>, vector<8x8xf32> -> vector<8x16xf32>
    %cst_19 = arith.constant 2.500000e-01 : f32
    %42 = vector.broadcast %cst_19 : f32 to vector<8x16xf32>
    %43 = arith.mulf %41, %42 : vector<8x16xf32>
    %44 = arith.mulf %33, %23 : vector<8x8xf32>
    %45 = arith.mulf %34, %24 : vector<8x8xf32>
    %46 = arith.subf %44, %45 : vector<8x8xf32>
    %47 = arith.mulf %34, %23 : vector<8x8xf32>
    %48 = arith.mulf %33, %24 : vector<8x8xf32>
    %49 = arith.addf %47, %48 : vector<8x8xf32>
    %50 = tpu.concatenate %46, %49 in 1 : vector<8x8xf32>, vector<8x8xf32> -> vector<8x16xf32>
    %51 = arith.truncf %43 : vector<8x16xf32> to vector<8x16xbf16>
    %52 = arith.truncf %50 : vector<8x16xf32> to vector<8x16xbf16>
    %cst_20 = arith.constant dense<0.000000e+00> : vector<8x8xf32>
    %53 = tpu.matmul %51, %52, %cst_20 {dimension_numbers = #tpu.dot_dimension_numbers<[1], [1], [0], [0], [0, 0, 1, 0], [], []>} : vector<8x16xbf16>, vector<8x16xbf16>, vector<8x8xf32> -> vector<8x8xf32>
    %cst_21 = arith.constant 0xFF800000 : f32
    %54 = vector.broadcast %cst_21 : f32 to vector<8x8xf32>
    %55 = arith.select %27, %53, %54 : vector<8x8xi1>, vector<8x8xf32>
    %cst_22 = arith.constant dense<0xFF800000> : vector<8xf32>
    %56 = vector.multi_reduction <maximumf>, %55, %cst_22 [1] : vector<8x8xf32> to vector<8xf32>
    %57 = vector.shape_cast %56 : vector<8xf32> to vector<8x1xf32>
    %58 = vector.broadcast %57 : vector<8x1xf32> to vector<8x8xf32>
    %59 = arith.subf %55, %58 : vector<8x8xf32>
    %60 = math.exp %59 : vector<8x8xf32>
    %cst_23 = arith.constant dense<0.000000e+00> : vector<8xf32>
    %61 = vector.multi_reduction <add>, %60, %cst_23 [1] : vector<8x8xf32> to vector<8xf32>
    %62 = vector.shape_cast %61 : vector<8xf32> to vector<8x1xf32>
    %63 = tpu.reciprocal %62 {approx = true} : vector<8x1xf32> -> vector<8x1xf32>
    %64 = vector.broadcast %63 : vector<8x1xf32> to vector<8x8xf32>
    %65 = arith.mulf %60, %64 : vector<8x8xf32>
    %66 = arith.truncf %65 : vector<8x8xf32> to vector<8x8xbf16>
    %cst_24 = arith.constant dense<0.000000e+00> : vector<8x16xf32>
    %67 = tpu.matmul %66, %30, %cst_24 {dimension_numbers = #tpu.dot_dimension_numbers<[1], [0], [0], [1], [0, 0, 1, 1], [], []>} : vector<8x8xbf16>, vector<8x16xbf16>, vector<8x16xf32> -> vector<8x16xf32>
    %68 = vector.extract_strided_slice %17 {offsets = [0, 16], sizes = [8, 16], strides = [1, 1]} : vector<8x64xf32> to vector<8x16xf32>
    %69 = vector.extract_strided_slice %19 {offsets = [0, 16], sizes = [8, 16], strides = [1, 1]} : vector<8x64xf32> to vector<8x16xf32>
    %70 = vector.extract_strided_slice %22 {offsets = [0, 16], sizes = [8, 16], strides = [1, 1]} : vector<8x64xbf16> to vector<8x16xbf16>
    %71 = vector.extract_strided_slice %68 {offsets = [0, 0], sizes = [8, 8], strides = [1, 1]} : vector<8x16xf32> to vector<8x8xf32>
    %72 = vector.extract_strided_slice %68 {offsets = [0, 8], sizes = [8, 8], strides = [1, 1]} : vector<8x16xf32> to vector<8x8xf32>
    %73 = vector.extract_strided_slice %69 {offsets = [0, 0], sizes = [8, 8], strides = [1, 1]} : vector<8x16xf32> to vector<8x8xf32>
    %74 = vector.extract_strided_slice %69 {offsets = [0, 8], sizes = [8, 8], strides = [1, 1]} : vector<8x16xf32> to vector<8x8xf32>
    %75 = arith.mulf %71, %23 : vector<8x8xf32>
    %76 = arith.mulf %72, %24 : vector<8x8xf32>
    %77 = arith.subf %75, %76 : vector<8x8xf32>
    %78 = arith.mulf %72, %23 : vector<8x8xf32>
    %79 = arith.mulf %71, %24 : vector<8x8xf32>
    %80 = arith.addf %78, %79 : vector<8x8xf32>
    %81 = tpu.concatenate %77, %80 in 1 : vector<8x8xf32>, vector<8x8xf32> -> vector<8x16xf32>
    %cst_25 = arith.constant 2.500000e-01 : f32
    %82 = vector.broadcast %cst_25 : f32 to vector<8x16xf32>
    %83 = arith.mulf %81, %82 : vector<8x16xf32>
    %84 = arith.mulf %73, %23 : vector<8x8xf32>
    %85 = arith.mulf %74, %24 : vector<8x8xf32>
    %86 = arith.subf %84, %85 : vector<8x8xf32>
    %87 = arith.mulf %74, %23 : vector<8x8xf32>
    %88 = arith.mulf %73, %24 : vector<8x8xf32>
    %89 = arith.addf %87, %88 : vector<8x8xf32>
    %90 = tpu.concatenate %86, %89 in 1 : vector<8x8xf32>, vector<8x8xf32> -> vector<8x16xf32>
    %91 = arith.truncf %83 : vector<8x16xf32> to vector<8x16xbf16>
    %92 = arith.truncf %90 : vector<8x16xf32> to vector<8x16xbf16>
    %cst_26 = arith.constant dense<0.000000e+00> : vector<8x8xf32>
    %93 = tpu.matmul %91, %92, %cst_26 {dimension_numbers = #tpu.dot_dimension_numbers<[1], [1], [0], [0], [0, 0, 1, 0], [], []>} : vector<8x16xbf16>, vector<8x16xbf16>, vector<8x8xf32> -> vector<8x8xf32>
    %cst_27 = arith.constant 0xFF800000 : f32
    %94 = vector.broadcast %cst_27 : f32 to vector<8x8xf32>
    %95 = arith.select %27, %93, %94 : vector<8x8xi1>, vector<8x8xf32>
    %cst_28 = arith.constant dense<0xFF800000> : vector<8xf32>
    %96 = vector.multi_reduction <maximumf>, %95, %cst_28 [1] : vector<8x8xf32> to vector<8xf32>
    %97 = vector.shape_cast %96 : vector<8xf32> to vector<8x1xf32>
    %98 = vector.broadcast %97 : vector<8x1xf32> to vector<8x8xf32>
    %99 = arith.subf %95, %98 : vector<8x8xf32>
    %100 = math.exp %99 : vector<8x8xf32>
    %cst_29 = arith.constant dense<0.000000e+00> : vector<8xf32>
    %101 = vector.multi_reduction <add>, %100, %cst_29 [1] : vector<8x8xf32> to vector<8xf32>
    %102 = vector.shape_cast %101 : vector<8xf32> to vector<8x1xf32>
    %103 = tpu.reciprocal %102 {approx = true} : vector<8x1xf32> -> vector<8x1xf32>
    %104 = vector.broadcast %103 : vector<8x1xf32> to vector<8x8xf32>
    %105 = arith.mulf %100, %104 : vector<8x8xf32>
    %106 = arith.truncf %105 : vector<8x8xf32> to vector<8x8xbf16>
    %cst_30 = arith.constant dense<0.000000e+00> : vector<8x16xf32>
    %107 = tpu.matmul %106, %70, %cst_30 {dimension_numbers = #tpu.dot_dimension_numbers<[1], [0], [0], [1], [0, 0, 1, 1], [], []>} : vector<8x8xbf16>, vector<8x16xbf16>, vector<8x16xf32> -> vector<8x16xf32>
    %108 = vector.extract_strided_slice %17 {offsets = [0, 32], sizes = [8, 16], strides = [1, 1]} : vector<8x64xf32> to vector<8x16xf32>
    %109 = vector.extract_strided_slice %19 {offsets = [0, 32], sizes = [8, 16], strides = [1, 1]} : vector<8x64xf32> to vector<8x16xf32>
    %110 = vector.extract_strided_slice %22 {offsets = [0, 32], sizes = [8, 16], strides = [1, 1]} : vector<8x64xbf16> to vector<8x16xbf16>
    %111 = vector.extract_strided_slice %108 {offsets = [0, 0], sizes = [8, 8], strides = [1, 1]} : vector<8x16xf32> to vector<8x8xf32>
    %112 = vector.extract_strided_slice %108 {offsets = [0, 8], sizes = [8, 8], strides = [1, 1]} : vector<8x16xf32> to vector<8x8xf32>
    %113 = vector.extract_strided_slice %109 {offsets = [0, 0], sizes = [8, 8], strides = [1, 1]} : vector<8x16xf32> to vector<8x8xf32>
    %114 = vector.extract_strided_slice %109 {offsets = [0, 8], sizes = [8, 8], strides = [1, 1]} : vector<8x16xf32> to vector<8x8xf32>
    %115 = arith.mulf %111, %23 : vector<8x8xf32>
    %116 = arith.mulf %112, %24 : vector<8x8xf32>
    %117 = arith.subf %115, %116 : vector<8x8xf32>
    %118 = arith.mulf %112, %23 : vector<8x8xf32>
    %119 = arith.mulf %111, %24 : vector<8x8xf32>
    %120 = arith.addf %118, %119 : vector<8x8xf32>
    %121 = tpu.concatenate %117, %120 in 1 : vector<8x8xf32>, vector<8x8xf32> -> vector<8x16xf32>
    %cst_31 = arith.constant 2.500000e-01 : f32
    %122 = vector.broadcast %cst_31 : f32 to vector<8x16xf32>
    %123 = arith.mulf %121, %122 : vector<8x16xf32>
    %124 = arith.mulf %113, %23 : vector<8x8xf32>
    %125 = arith.mulf %114, %24 : vector<8x8xf32>
    %126 = arith.subf %124, %125 : vector<8x8xf32>
    %127 = arith.mulf %114, %23 : vector<8x8xf32>
    %128 = arith.mulf %113, %24 : vector<8x8xf32>
    %129 = arith.addf %127, %128 : vector<8x8xf32>
    %130 = tpu.concatenate %126, %129 in 1 : vector<8x8xf32>, vector<8x8xf32> -> vector<8x16xf32>
    %131 = arith.truncf %123 : vector<8x16xf32> to vector<8x16xbf16>
    %132 = arith.truncf %130 : vector<8x16xf32> to vector<8x16xbf16>
    %cst_32 = arith.constant dense<0.000000e+00> : vector<8x8xf32>
    %133 = tpu.matmul %131, %132, %cst_32 {dimension_numbers = #tpu.dot_dimension_numbers<[1], [1], [0], [0], [0, 0, 1, 0], [], []>} : vector<8x16xbf16>, vector<8x16xbf16>, vector<8x8xf32> -> vector<8x8xf32>
    %cst_33 = arith.constant 0xFF800000 : f32
    %134 = vector.broadcast %cst_33 : f32 to vector<8x8xf32>
    %135 = arith.select %27, %133, %134 : vector<8x8xi1>, vector<8x8xf32>
    %cst_34 = arith.constant dense<0xFF800000> : vector<8xf32>
    %136 = vector.multi_reduction <maximumf>, %135, %cst_34 [1] : vector<8x8xf32> to vector<8xf32>
    %137 = vector.shape_cast %136 : vector<8xf32> to vector<8x1xf32>
    %138 = vector.broadcast %137 : vector<8x1xf32> to vector<8x8xf32>
    %139 = arith.subf %135, %138 : vector<8x8xf32>
    %140 = math.exp %139 : vector<8x8xf32>
    %cst_35 = arith.constant dense<0.000000e+00> : vector<8xf32>
    %141 = vector.multi_reduction <add>, %140, %cst_35 [1] : vector<8x8xf32> to vector<8xf32>
    %142 = vector.shape_cast %141 : vector<8xf32> to vector<8x1xf32>
    %143 = tpu.reciprocal %142 {approx = true} : vector<8x1xf32> -> vector<8x1xf32>
    %144 = vector.broadcast %143 : vector<8x1xf32> to vector<8x8xf32>
    %145 = arith.mulf %140, %144 : vector<8x8xf32>
    %146 = arith.truncf %145 : vector<8x8xf32> to vector<8x8xbf16>
    %cst_36 = arith.constant dense<0.000000e+00> : vector<8x16xf32>
    %147 = tpu.matmul %146, %110, %cst_36 {dimension_numbers = #tpu.dot_dimension_numbers<[1], [0], [0], [1], [0, 0, 1, 1], [], []>} : vector<8x8xbf16>, vector<8x16xbf16>, vector<8x16xf32> -> vector<8x16xf32>
    %148 = vector.extract_strided_slice %17 {offsets = [0, 48], sizes = [8, 16], strides = [1, 1]} : vector<8x64xf32> to vector<8x16xf32>
    %149 = vector.extract_strided_slice %19 {offsets = [0, 48], sizes = [8, 16], strides = [1, 1]} : vector<8x64xf32> to vector<8x16xf32>
    %150 = vector.extract_strided_slice %22 {offsets = [0, 48], sizes = [8, 16], strides = [1, 1]} : vector<8x64xbf16> to vector<8x16xbf16>
    %151 = vector.extract_strided_slice %148 {offsets = [0, 0], sizes = [8, 8], strides = [1, 1]} : vector<8x16xf32> to vector<8x8xf32>
    %152 = vector.extract_strided_slice %148 {offsets = [0, 8], sizes = [8, 8], strides = [1, 1]} : vector<8x16xf32> to vector<8x8xf32>
    %153 = vector.extract_strided_slice %149 {offsets = [0, 0], sizes = [8, 8], strides = [1, 1]} : vector<8x16xf32> to vector<8x8xf32>
    %154 = vector.extract_strided_slice %149 {offsets = [0, 8], sizes = [8, 8], strides = [1, 1]} : vector<8x16xf32> to vector<8x8xf32>
    %155 = arith.mulf %151, %23 : vector<8x8xf32>
    %156 = arith.mulf %152, %24 : vector<8x8xf32>
    %157 = arith.subf %155, %156 : vector<8x8xf32>
    %158 = arith.mulf %152, %23 : vector<8x8xf32>
    %159 = arith.mulf %151, %24 : vector<8x8xf32>
    %160 = arith.addf %158, %159 : vector<8x8xf32>
    %161 = tpu.concatenate %157, %160 in 1 : vector<8x8xf32>, vector<8x8xf32> -> vector<8x16xf32>
    %cst_37 = arith.constant 2.500000e-01 : f32
    %162 = vector.broadcast %cst_37 : f32 to vector<8x16xf32>
    %163 = arith.mulf %161, %162 : vector<8x16xf32>
    %164 = arith.mulf %153, %23 : vector<8x8xf32>
    %165 = arith.mulf %154, %24 : vector<8x8xf32>
    %166 = arith.subf %164, %165 : vector<8x8xf32>
    %167 = arith.mulf %154, %23 : vector<8x8xf32>
    %168 = arith.mulf %153, %24 : vector<8x8xf32>
    %169 = arith.addf %167, %168 : vector<8x8xf32>
    %170 = tpu.concatenate %166, %169 in 1 : vector<8x8xf32>, vector<8x8xf32> -> vector<8x16xf32>
    %171 = arith.truncf %163 : vector<8x16xf32> to vector<8x16xbf16>
    %172 = arith.truncf %170 : vector<8x16xf32> to vector<8x16xbf16>
    %cst_38 = arith.constant dense<0.000000e+00> : vector<8x8xf32>
    %173 = tpu.matmul %171, %172, %cst_38 {dimension_numbers = #tpu.dot_dimension_numbers<[1], [1], [0], [0], [0, 0, 1, 0], [], []>} : vector<8x16xbf16>, vector<8x16xbf16>, vector<8x8xf32> -> vector<8x8xf32>
    %cst_39 = arith.constant 0xFF800000 : f32
    %174 = vector.broadcast %cst_39 : f32 to vector<8x8xf32>
    %175 = arith.select %27, %173, %174 : vector<8x8xi1>, vector<8x8xf32>
    %cst_40 = arith.constant dense<0xFF800000> : vector<8xf32>
    %176 = vector.multi_reduction <maximumf>, %175, %cst_40 [1] : vector<8x8xf32> to vector<8xf32>
    %177 = vector.shape_cast %176 : vector<8xf32> to vector<8x1xf32>
    %178 = vector.broadcast %177 : vector<8x1xf32> to vector<8x8xf32>
    %179 = arith.subf %175, %178 : vector<8x8xf32>
    %180 = math.exp %179 : vector<8x8xf32>
    %cst_41 = arith.constant dense<0.000000e+00> : vector<8xf32>
    %181 = vector.multi_reduction <add>, %180, %cst_41 [1] : vector<8x8xf32> to vector<8xf32>
    %182 = vector.shape_cast %181 : vector<8xf32> to vector<8x1xf32>
    %183 = tpu.reciprocal %182 {approx = true} : vector<8x1xf32> -> vector<8x1xf32>
    %184 = vector.broadcast %183 : vector<8x1xf32> to vector<8x8xf32>
    %185 = arith.mulf %180, %184 : vector<8x8xf32>
    %186 = arith.truncf %185 : vector<8x8xf32> to vector<8x8xbf16>
    %cst_42 = arith.constant dense<0.000000e+00> : vector<8x16xf32>
    %187 = tpu.matmul %186, %150, %cst_42 {dimension_numbers = #tpu.dot_dimension_numbers<[1], [0], [0], [1], [0, 0, 1, 1], [], []>} : vector<8x8xbf16>, vector<8x16xbf16>, vector<8x16xf32> -> vector<8x16xf32>
    %188 = tpu.concatenate %67, %107, %147, %187 in 1 : vector<8x16xf32>, vector<8x16xf32>, vector<8x16xf32>, vector<8x16xf32> -> vector<8x64xf32>
    %189 = arith.truncf %188 : vector<8x64xf32> to vector<8x64xbf16>
    %c0_43 = arith.constant 0 : index
    %c0_44 = arith.constant 0 : index
    %190 = vector.load %arg5[%c0_43, %c0_44] : memref<64x64xbf16, #tpu.memory_space<vmem>>, vector<64x64xbf16>
    %cst_45 = arith.constant dense<0.000000e+00> : vector<8x64xf32>
    %191 = tpu.matmul %189, %190, %cst_45 {dimension_numbers = #tpu.dot_dimension_numbers<[1], [0], [0], [1], [0, 0, 1, 1], [], []>} : vector<8x64xbf16>, vector<64x64xbf16>, vector<8x64xf32> -> vector<8x64xf32>
    %192 = arith.addf %1, %191 : vector<8x64xf32>
    %c0_46 = arith.constant 0 : index
    %c0_47 = arith.constant 0 : index
    %193 = vector.load %arg10[%c0_46, %c0_47] : memref<1x64xf32, #tpu.memory_space<vmem>>, vector<1x64xf32>
    %194 = arith.mulf %192, %192 : vector<8x64xf32>
    %cst_48 = arith.constant dense<0.000000e+00> : vector<8xf32>
    %195 = vector.multi_reduction <add>, %194, %cst_48 [1] : vector<8x64xf32> to vector<8xf32>
    %196 = vector.shape_cast %195 : vector<8xf32> to vector<8x1xf32>
    %cst_49 = arith.constant 6.400000e+01 : f32
    %197 = vector.broadcast %cst_49 : f32 to vector<8x1xf32>
    %198 = arith.divf %196, %197 : vector<8x1xf32>
    %cst_50 = arith.constant 9.99999974E-6 : f32
    %199 = vector.broadcast %cst_50 : f32 to vector<8x1xf32>
    %200 = arith.addf %198, %199 : vector<8x1xf32>
    %201 = math.rsqrt %200 : vector<8x1xf32>
    %202 = vector.broadcast %201 : vector<8x1xf32> to vector<8x64xf32>
    %203 = vector.broadcast %193 : vector<1x64xf32> to vector<8x64xf32>
    %204 = arith.mulf %202, %203 : vector<8x64xf32>
    %205 = arith.mulf %192, %204 : vector<8x64xf32>
    %206 = arith.truncf %205 : vector<8x64xf32> to vector<8x64xbf16>
    %c0_51 = arith.constant 0 : index
    %c0_52 = arith.constant 0 : index
    %207 = vector.load %arg6[%c0_51, %c0_52] : memref<64x192xbf16, #tpu.memory_space<vmem>>, vector<64x192xbf16>
    %cst_53 = arith.constant dense<0.000000e+00> : vector<8x192xf32>
    %208 = tpu.matmul %206, %207, %cst_53 {dimension_numbers = #tpu.dot_dimension_numbers<[1], [0], [0], [1], [0, 0, 1, 1], [], []>} : vector<8x64xbf16>, vector<64x192xbf16>, vector<8x192xf32> -> vector<8x192xf32>
    %c0_54 = arith.constant 0 : index
    %c0_55 = arith.constant 0 : index
    %209 = vector.load %arg8[%c0_54, %c0_55] : memref<64x192xbf16, #tpu.memory_space<vmem>>, vector<64x192xbf16>
    %cst_56 = arith.constant dense<0.000000e+00> : vector<8x192xf32>
    %210 = tpu.matmul %206, %209, %cst_56 {dimension_numbers = #tpu.dot_dimension_numbers<[1], [0], [0], [1], [0, 0, 1, 1], [], []>} : vector<8x64xbf16>, vector<64x192xbf16>, vector<8x192xf32> -> vector<8x192xf32>
    %211 = arith.negf %208 : vector<8x192xf32>
    %212 = math.exp %211 : vector<8x192xf32>
    %cst_57 = arith.constant 1.000000e+00 : f32
    %213 = vector.broadcast %cst_57 : f32 to vector<8x192xf32>
    %214 = arith.addf %213, %212 : vector<8x192xf32>
    %215 = arith.divf %213, %214 : vector<8x192xf32>
    %216 = arith.mulf %208, %215 : vector<8x192xf32>
    %217 = arith.mulf %216, %210 : vector<8x192xf32>
    %218 = arith.truncf %217 : vector<8x192xf32> to vector<8x192xbf16>
    %c0_58 = arith.constant 0 : index
    %c0_59 = arith.constant 0 : index
    %219 = vector.load %arg7[%c0_58, %c0_59] : memref<192x64xbf16, #tpu.memory_space<vmem>>, vector<192x64xbf16>
    %cst_60 = arith.constant dense<0.000000e+00> : vector<8x64xf32>
    %220 = tpu.matmul %218, %219, %cst_60 {dimension_numbers = #tpu.dot_dimension_numbers<[1], [0], [0], [1], [0, 0, 1, 1], [], []>} : vector<8x192xbf16>, vector<192x64xbf16>, vector<8x64xf32> -> vector<8x64xf32>
    %221 = arith.addf %192, %220 : vector<8x64xf32>
    %c0_61 = arith.constant 0 : index
    %c0_62 = arith.constant 0 : index
    %c0_63 = arith.constant 0 : index
    %222 = vector.load %arg13[%c0_61, %c0_62, %c0_63] : memref<1x8x64xf32, #tpu.memory_space<vmem>>, vector<1x8x64xf32>
    %223 = vector.shape_cast %222 : vector<1x8x64xf32> to vector<8x64xf32>
    %224 = vector.shape_cast %221 : vector<8x64xf32> to vector<1x8x64xf32>
    tpu.vector_store %arg13[%c0_61, %c0_62, %c0_63], %224 {strides = array<i32>} : memref<1x8x64xf32, #tpu.memory_space<vmem>>, vector<1x8x64xf32>,
    return
  }
  func.func @transform_0(%arg0: i32) -> (i32, i32, i32) {
    %c0_i32 = arith.constant 0 : i32
    %c0_i32_0 = arith.constant 0 : i32
    %c0_i32_1 = arith.constant 0 : i32
    return %arg0, %c0_i32, %c0_i32_0 : i32, i32, i32
  }
  func.func @transform_1(%arg0: i32) -> (i32, i32) {
    %c0_i32 = arith.constant 0 : i32
    %c0_i32_0 = arith.constant 0 : i32
    %c0_i32_1 = arith.constant 0 : i32
    return %c0_i32, %c0_i32_0 : i32, i32
  }
  func.func @transform_2(%arg0: i32) -> (i32, i32) {
    %c0_i32 = arith.constant 0 : i32
    %c0_i32_0 = arith.constant 0 : i32
    %c0_i32_1 = arith.constant 0 : i32
    return %c0_i32, %c0_i32_0 : i32, i32
  }
  func.func @transform_3(%arg0: i32) -> (i32, i32) {
    %c0_i32 = arith.constant 0 : i32
    %c0_i32_0 = arith.constant 0 : i32
    %c0_i32_1 = arith.constant 0 : i32
    return %c0_i32, %c0_i32_0 : i32, i32
  }
  func.func @transform_4(%arg0: i32) -> (i32, i32) {
    %c0_i32 = arith.constant 0 : i32
    %c0_i32_0 = arith.constant 0 : i32
    %c0_i32_1 = arith.constant 0 : i32
    return %c0_i32, %c0_i32_0 : i32, i32
  }
  func.func @transform_5(%arg0: i32) -> (i32, i32) {
    %c0_i32 = arith.constant 0 : i32
    %c0_i32_0 = arith.constant 0 : i32
    %c0_i32_1 = arith.constant 0 : i32
    return %c0_i32, %c0_i32_0 : i32, i32
  }
  func.func @transform_6(%arg0: i32) -> (i32, i32) {
    %c0_i32 = arith.constant 0 : i32
    %c0_i32_0 = arith.constant 0 : i32
    %c0_i32_1 = arith.constant 0 : i32
    return %c0_i32, %c0_i32_0 : i32, i32
  }
  func.func @transform_7(%arg0: i32) -> (i32, i32) {
    %c0_i32 = arith.constant 0 : i32
    %c0_i32_0 = arith.constant 0 : i32
    %c0_i32_1 = arith.constant 0 : i32
    return %c0_i32, %c0_i32_0 : i32, i32
  }
  func.func @transform_8(%arg0: i32) -> (i32, i32) {
    %c0_i32 = arith.constant 0 : i32
    %c0_i32_0 = arith.constant 0 : i32
    %c0_i32_1 = arith.constant 0 : i32
    return %c0_i32, %c0_i32_0 : i32, i32
  }
  func.func @transform_9(%arg0: i32) -> (i32, i32) {
    %c0_i32 = arith.constant 0 : i32
    %c0_i32_0 = arith.constant 0 : i32
    %c0_i32_1 = arith.constant 0 : i32
    return %c0_i32, %c0_i32_0 : i32, i32
  }
  func.func @transform_10(%arg0: i32) -> (i32, i32) {
    %c0_i32 = arith.constant 0 : i32
    %c0_i32_0 = arith.constant 0 : i32
    %c0_i32_1 = arith.constant 0 : i32
    return %c0_i32, %c0_i32_0 : i32, i32
  }
  func.func @transform_11(%arg0: i32) -> (i32, i32) {
    %c0_i32 = arith.constant 0 : i32
    %c0_i32_0 = arith.constant 0 : i32
    %c0_i32_1 = arith.constant 0 : i32
    return %c0_i32, %c0_i32_0 : i32, i32
  }
  func.func @transform_12(%arg0: i32) -> (i32, i32, i32) {
    %c0_i32 = arith.constant 0 : i32
    %c0_i32_0 = arith.constant 0 : i32
    %c0_i32_1 = arith.constant 0 : i32
    return %arg0, %c0_i32, %c0_i32_0 : i32, i32, i32
  }
}

</mosaic_0001>

<llo_original>
// kernel: tpu_custom_call.1
$region0: #{tpu_custom_call.1}
  #allocation0 [shape = 'u32[]', space=smem, size = 0x4, offset = 0x4, fixed_abs, tag = 'smem constant byte address 0x4 - core index']
  #allocation1 [shape = 'u32[144,128]{1,0:T(1,128)}', space=vmem, size = 0x12000, scoped, tag = 'internal scratch']
  %s0 = inlined_call_operand.hbm [shape: f32[2,8,64], index: 0, kind: input, shape index: {}]
  %s1 = inlined_call_operand.vmem [shape: bf16[64,64], index: 1, kind: input, shape index: {}]
  %s2 = inlined_call_operand.hbm [shape: bf16[64,64], index: 2, kind: input, shape index: {}]
  %s3 = inlined_call_operand.hbm [shape: bf16[64,64], index: 3, kind: input, shape index: {}]
  %s4 = inlined_call_operand.hbm [shape: bf16[64,64], index: 4, kind: input, shape index: {}]
  %s5 = inlined_call_operand.vmem [shape: bf16[64,192], index: 5, kind: input, shape index: {}]
  %s6 = inlined_call_operand.vmem [shape: bf16[192,64], index: 6, kind: input, shape index: {}]
  %s7 = inlined_call_operand.vmem [shape: bf16[64,192], index: 7, kind: input, shape index: {}]
  %s8 = inlined_call_operand.vmem [shape: f32[1,64], index: 8, kind: input, shape index: {}]
  %s9 = inlined_call_operand.vmem [shape: f32[1,64], index: 9, kind: input, shape index: {}]
  %s10 = inlined_call_operand.vmem [shape: f32[8,8], index: 10, kind: input, shape index: {}]
  %s11 = inlined_call_operand.vmem [shape: f32[8,8], index: 11, kind: input, shape index: {}]
  %s12 = inlined_call_operand.hbm [shape: f32[2,8,64], index: 12, kind: output, shape index: {}]
  %s13 = sld [smem:[#allocation0]]
  $region97: #{tpu_custom_call.1} parent=0
    _
  %s15 = ssub.s32 1, %s13
  %s16 = scalar_select 0, %s15, %s13
  $region1: #{tpu_custom_call.1} parent=0
    #allocation2 [shape = 'u8[8192]{0}', space=vmem, size = 0x2000, scoped, tag = 'input window, operand 0']
    #allocation3 [shape = 's32[2]{0}', space=sflag, size = 0x8, scoped, tag = 'scoped memory for tpu_custom_call.1']
    #allocation4 [shape = 's32[2]{0}', space=sflag, size = 0x8, scoped, tag = 'scoped memory for tpu_custom_call.1']
    #allocation5 [shape = 'u8[16384]{0}', space=vmem, size = 0x4000, scoped, tag = 'input window, operand 2, single buffered']
    #allocation6 [shape = 's32[1]{0}', space=sflag, size = 0x4, scoped, tag = 'scoped memory for tpu_custom_call.1']
    #allocation7 [shape = 'u8[16384]{0}', space=vmem, size = 0x4000, scoped, tag = 'input window, operand 3, single buffered']
    #allocation8 [shape = 'u8[16384]{0}', space=vmem, size = 0x4000, scoped, tag = 'input window, operand 4, single buffered']
    #allocation9 [shape = 's32[1]{0}', space=sflag, size = 0x4, scoped, tag = 'scoped memory for tpu_custom_call.1']
    #allocation10 [shape = 'u8[8192]{0}', space=vmem, size = 0x2000, scoped, tag = 'output window, operand 0']
    %17 = vsyncpa [#allocation3], 0
    %s18 = scalar_lea.sflag [#allocation3], 1
    %19 = vsyncpa %s18, 0
    %20 = vsyncpa [#allocation6], 0
    %21 = vsyncpa [#allocation9], 0
    %22 = vsyncpa [#allocation4], 0
    %s23 = scalar_lea.sflag [#allocation4], 1
    %24 = vsyncpa %s23, 0
    loop: start=0, step=1, limit=4
    $region2: #{tpu_custom_call.1} parent=1 // loop_pre_header
      _
    $region3: #{tpu_custom_call.1} parent=1 // loop_header
      %s26 = sphi 0, %s30
      %p27 = scmp.ge.s32.totalorder %s26, 4
      %s36 = sphi 0, %s38
      %s39 = sphi 0, %s36
      %s40 = sphi 0, %s39
      %s56 = sphi 0, %s40
      %s60 = sphi 0, %s60
      %s62 = sphi 0, %s60
      %s63 = sphi 0, %s62
      %s77 = sphi 0, %s63
      %s81 = sphi 0, %s81
      %s83 = sphi 0, %s81
      %s84 = sphi 0, %s83
      %s98 = sphi 0, %s84
      %s102 = sphi 0, %s102
      %s104 = sphi 0, %s102
      %s105 = sphi 0, %s104
      %s119 = sphi 0, %s105
      %s123 = sphi 0, %s123
      %s125 = sphi 0, %s123
      %s126 = sphi 0, %s125
      %s140 = sphi 0, %s126
      %s144 = sphi 0, %s144
      %s146 = sphi 0, %s144
      %s147 = sphi 0, %s146
      %s161 = sphi 0, %s147
      %s165 = sphi 0, %s165
      %s167 = sphi 0, %s165
      %s168 = sphi 0, %s167
      %s182 = sphi 0, %s168
      %s186 = sphi 0, %s186
      %s188 = sphi 0, %s186
      %s189 = sphi 0, %s188
      %s203 = sphi 0, %s189
      %s207 = sphi 0, %s207
      %s209 = sphi 0, %s207
      %s210 = sphi 0, %s209
      %s224 = sphi 0, %s210
      %s228 = sphi 0, %s228
      %s230 = sphi 0, %s228
      %s231 = sphi 0, %s230
      %s245 = sphi 0, %s231
      %s249 = sphi 0, %s249
      %s251 = sphi 0, %s249
      %s252 = sphi 0, %s251
      %s266 = sphi 0, %s252
      %s270 = sphi 0, %s270
      %s272 = sphi 0, %s270
      %s273 = sphi 0, %s272
      %s287 = sphi 0, %s273
      %s293 = sphi 0, %s295
      %s296 = sphi 0, %s293
      %s297 = sphi 0, %s296
      %s313 = sphi 0, %s297
    $region4: #{tpu_custom_call.1} parent=1 // loop_header_branch
      %29 = sbr.rel (%p27) target = $region8
    $region5: #{tpu_custom_call.1} parent=1 // loop_body
      %s31 = ssub.s32 %s26, 1
      %s32 = ssub.s32 %s26, 2
      %s33 = sadd.s32 %s26, 1
      %s34 = ssub.s32 %s26, %s33
      %p35 = scmp.eq.s32.totalorder %s34, 0
      %s37 = sadd.s32 %s36, 1
      %s38 = scalar_select %p35, %s36, %s37
      %p41 = pneg %p35
      %p42 = scmp.eq.s32.totalorder %s26, 1
      %p43 = por %p41, %p42
      %p44 = scmp.ne.s32.totalorder %s36, %s39
      %p45 = scmp.eq.s32.totalorder %s26, 0
      %p46 = por %p44, %p45
      %p47 = scmp.ne.s32.totalorder %s36, %s39
      %p48 = scmp.eq.s32.totalorder %s31, 1
      %p49 = por %p47, %p48
      %p50 = scmp.ne.s32.totalorder %s39, %s40
      %p51 = scmp.eq.s32.totalorder %s31, 0
      %p52 = por %p50, %p51
      %p53 = scmp.ne.s32.totalorder %s39, %s40
      %p54 = scmp.eq.s32.totalorder %s32, 1
      %p55 = por %p53, %p54
      %p57 = scmp.ne.s32.totalorder %s40, %s56
      %p58 = scmp.eq.s32.totalorder %s32, 0
      %p59 = por %p57, %p58
      %s61 = sadd.s32 %s60, 1
      %p64 = scmp.eq.s32.totalorder %s26, 1
      %p65 = scmp.ne.s32.totalorder %s60, %s62
      %p66 = scmp.eq.s32.totalorder %s26, 0
      %p67 = por %p65, %p66
      %p68 = scmp.ne.s32.totalorder %s60, %s62
      %p69 = scmp.eq.s32.totalorder %s31, 1
      %p70 = por %p68, %p69
      %p71 = scmp.ne.s32.totalorder %s62, %s63
      %p72 = scmp.eq.s32.totalorder %s31, 0
      %p73 = por %p71, %p72
      %p74 = scmp.ne.s32.totalorder %s62, %s63
      %p75 = scmp.eq.s32.totalorder %s32, 1
      %p76 = por %p74, %p75
      %p78 = scmp.ne.s32.totalorder %s63, %s77
      %p79 = scmp.eq.s32.totalorder %s32, 0
      %p80 = por %p78, %p79
      %s82 = sadd.s32 %s81, 1
      %p85 = scmp.eq.s32.totalorder %s26, 1
      %p86 = scmp.ne.s32.totalorder %s81, %s83
      %p87 = scmp.eq.s32.totalorder %s26, 0
      %p88 = por %p86, %p87
      %p89 = scmp.ne.s32.totalorder %s81, %s83
      %p90 = scmp.eq.s32.totalorder %s31, 1
      %p91 = por %p89, %p90
      %p92 = scmp.ne.s32.totalorder %s83, %s84
      %p93 = scmp.eq.s32.totalorder %s31, 0
      %p94 = por %p92, %p93
      %p95 = scmp.ne.s32.totalorder %s83, %s84
      %p96 = scmp.eq.s32.totalorder %s32, 1
      %p97 = por %p95, %p96
      %p99 = scmp.ne.s32.totalorder %s84, %s98
      %p100 = scmp.eq.s32.totalorder %s32, 0
      %p101 = por %p99, %p100
      %s103 = sadd.s32 %s102, 1
      %p106 = scmp.eq.s32.totalorder %s26, 1
      %p107 = scmp.ne.s32.totalorder %s102, %s104
      %p108 = scmp.eq.s32.totalorder %s26, 0
      %p109 = por %p107, %p108
      %p110 = scmp.ne.s32.totalorder %s102, %s104
      %p111 = scmp.eq.s32.totalorder %s31, 1
      %p112 = por %p110, %p111
      %p113 = scmp.ne.s32.totalorder %s104, %s105
      %p114 = scmp.eq.s32.totalorder %s31, 0
      %p115 = por %p113, %p114
      %p116 = scmp.ne.s32.totalorder %s104, %s105
      %p117 = scmp.eq.s32.totalorder %s32, 1
      %p118 = por %p116, %p117
      %p120 = scmp.ne.s32.totalorder %s105, %s119
      %p121 = scmp.eq.s32.totalorder %s32, 0
      %p122 = por %p120, %p121
      %s124 = sadd.s32 %s123, 1
      %p127 = scmp.eq.s32.totalorder %s26, 1
      %p128 = scmp.ne.s32.totalorder %s123, %s125
      %p129 = scmp.eq.s32.totalorder %s26, 0
      %p130 = por %p128, %p129
      %p131 = scmp.ne.s32.totalorder %s123, %s125
      %p132 = scmp.eq.s32.totalorder %s31, 1
      %p133 = por %p131, %p132
      %p134 = scmp.ne.s32.totalorder %s125, %s126
      %p135 = scmp.eq.s32.totalorder %s31, 0
      %p136 = por %p134, %p135
      %p137 = scmp.ne.s32.totalorder %s125, %s126
      %p138 = scmp.eq.s32.totalorder %s32, 1
      %p139 = por %p137, %p138
      %p141 = scmp.ne.s32.totalorder %s126, %s140
      %p142 = scmp.eq.s32.totalorder %s32, 0
      %p143 = por %p141, %p142
      %s145 = sadd.s32 %s144, 1
      %p148 = scmp.eq.s32.totalorder %s26, 1
      %p149 = scmp.ne.s32.totalorder %s144, %s146
      %p150 = scmp.eq.s32.totalorder %s26, 0
      %p151 = por %p149, %p150
      %p152 = scmp.ne.s32.totalorder %s144, %s146
      %p153 = scmp.eq.s32.totalorder %s31, 1
      %p154 = por %p152, %p153
      %p155 = scmp.ne.s32.totalorder %s146, %s147
      %p156 = scmp.eq.s32.totalorder %s31, 0
      %p157 = por %p155, %p156
      %p158 = scmp.ne.s32.totalorder %s146, %s147
      %p159 = scmp.eq.s32.totalorder %s32, 1
      %p160 = por %p158, %p159
      %p162 = scmp.ne.s32.totalorder %s147, %s161
      %p163 = scmp.eq.s32.totalorder %s32, 0
      %p164 = por %p162, %p163
      %s166 = sadd.s32 %s165, 1
      %p169 = scmp.eq.s32.totalorder %s26, 1
      %p170 = scmp.ne.s32.totalorder %s165, %s167
      %p171 = scmp.eq.s32.totalorder %s26, 0
      %p172 = por %p170, %p171
      %p173 = scmp.ne.s32.totalorder %s165, %s167
      %p174 = scmp.eq.s32.totalorder %s31, 1
      %p175 = por %p173, %p174
      %p176 = scmp.ne.s32.totalorder %s167, %s168
      %p177 = scmp.eq.s32.totalorder %s31, 0
      %p178 = por %p176, %p177
      %p179 = scmp.ne.s32.totalorder %s167, %s168
      %p180 = scmp.eq.s32.totalorder %s32, 1
      %p181 = por %p179, %p180
      %p183 = scmp.ne.s32.totalorder %s168, %s182
      %p184 = scmp.eq.s32.totalorder %s32, 0
      %p185 = por %p183, %p184
      %s187 = sadd.s32 %s186, 1
      %p190 = scmp.eq.s32.totalorder %s26, 1
      %p191 = scmp.ne.s32.totalorder %s186, %s188
      %p192 = scmp.eq.s32.totalorder %s26, 0
      %p193 = por %p191, %p192
      %p194 = scmp.ne.s32.totalorder %s186, %s188
      %p195 = scmp.eq.s32.totalorder %s31, 1
      %p196 = por %p194, %p195
      %p197 = scmp.ne.s32.totalorder %s188, %s189
      %p198 = scmp.eq.s32.totalorder %s31, 0
      %p199 = por %p197, %p198
      %p200 = scmp.ne.s32.totalorder %s188, %s189
      %p201 = scmp.eq.s32.totalorder %s32, 1
      %p202 = por %p200, %p201
      %p204 = scmp.ne.s32.totalorder %s189, %s203
      %p205 = scmp.eq.s32.totalorder %s32, 0
      %p206 = por %p204, %p205
      %s208 = sadd.s32 %s207, 1
      %p211 = scmp.eq.s32.totalorder %s26, 1
      %p212 = scmp.ne.s32.totalorder %s207, %s209
      %p213 = scmp.eq.s32.totalorder %s26, 0
      %p214 = por %p212, %p213
      %p215 = scmp.ne.s32.totalorder %s207, %s209
      %p216 = scmp.eq.s32.totalorder %s31, 1
      %p217 = por %p215, %p216
      %p218 = scmp.ne.s32.totalorder %s209, %s210
      %p219 = scmp.eq.s32.totalorder %s31, 0
      %p220 = por %p218, %p219
      %p221 = scmp.ne.s32.totalorder %s209, %s210
      %p222 = scmp.eq.s32.totalorder %s32, 1
      %p223 = por %p221, %p222
      %p225 = scmp.ne.s32.totalorder %s210, %s224
      %p226 = scmp.eq.s32.totalorder %s32, 0
      %p227 = por %p225, %p226
      %s229 = sadd.s32 %s228, 1
      %p232 = scmp.eq.s32.totalorder %s26, 1
      %p233 = scmp.ne.s32.totalorder %s228, %s230
      %p234 = scmp.eq.s32.totalorder %s26, 0
      %p235 = por %p233, %p234
      %p236 = scmp.ne.s32.totalorder %s228, %s230
      %p237 = scmp.eq.s32.totalorder %s31, 1
      %p238 = por %p236, %p237
      %p239 = scmp.ne.s32.totalorder %s230, %s231
      %p240 = scmp.eq.s32.totalorder %s31, 0
      %p241 = por %p239, %p240
      %p242 = scmp.ne.s32.totalorder %s230, %s231
      %p243 = scmp.eq.s32.totalorder %s32, 1
      %p244 = por %p242, %p243
      %p246 = scmp.ne.s32.totalorder %s231, %s245
      %p247 = scmp.eq.s32.totalorder %s32, 0
      %p248 = por %p246, %p247
      %s250 = sadd.s32 %s249, 1
      %p253 = scmp.eq.s32.totalorder %s26, 1
      %p254 = scmp.ne.s32.totalorder %s249, %s251
      %p255 = scmp.eq.s32.totalorder %s26, 0
      %p256 = por %p254, %p255
      %p257 = scmp.ne.s32.totalorder %s249, %s251
      %p258 = scmp.eq.s32.totalorder %s31, 1
      %p259 = por %p257, %p258
      %p260 = scmp.ne.s32.totalorder %s251, %s252
      %p261 = scmp.eq.s32.totalorder %s31, 0
      %p262 = por %p260, %p261
      %p263 = scmp.ne.s32.totalorder %s251, %s252
      %p264 = scmp.eq.s32.totalorder %s32, 1
      %p265 = por %p263, %p264
      %p267 = scmp.ne.s32.totalorder %s252, %s266
      %p268 = scmp.eq.s32.totalorder %s32, 0
      %p269 = por %p267, %p268
      %s271 = sadd.s32 %s270, 1
      %p274 = scmp.eq.s32.totalorder %s26, 1
      %p275 = scmp.ne.s32.totalorder %s270, %s272
      %p276 = scmp.eq.s32.totalorder %s26, 0
      %p277 = por %p275, %p276
      %p278 = scmp.ne.s32.totalorder %s270, %s272
      %p279 = scmp.eq.s32.totalorder %s31, 1
      %p280 = por %p278, %p279
      %p281 = scmp.ne.s32.totalorder %s272, %s273
      %p282 = scmp.eq.s32.totalorder %s31, 0
      %p283 = por %p281, %p282
      %p284 = scmp.ne.s32.totalorder %s272, %s273
      %p285 = scmp.eq.s32.totalorder %s32, 1
      %p286 = por %p284, %p285
      %p288 = scmp.ne.s32.totalorder %s273, %s287
      %p289 = scmp.eq.s32.totalorder %s32, 0
      %p290 = por %p288, %p289
      %s291 = ssub.s32 %s26, %s33
      %p292 = scmp.eq.s32.totalorder %s291, 0
      %s294 = sadd.s32 %s293, 1
      %s295 = scalar_select %p292, %s293, %s294
      %p298 = pneg %p292
      %p299 = scmp.eq.s32.totalorder %s26, 1
      %p300 = por %p298, %p299
      %p301 = scmp.ne.s32.totalorder %s293, %s296
      %p302 = scmp.eq.s32.totalorder %s26, 0
      %p303 = por %p301, %p302
      %p304 = scmp.ne.s32.totalorder %s293, %s296
      %p305 = scmp.eq.s32.totalorder %s31, 1
      %p306 = por %p304, %p305
      %p307 = scmp.ne.s32.totalorder %s296, %s297
      %p308 = scmp.eq.s32.totalorder %s31, 0
      %p309 = por %p307, %p308
      %p310 = scmp.ne.s32.totalorder %s296, %s297
      %p311 = scmp.eq.s32.totalorder %s32, 1
      %p312 = por %p310, %p311
      %p314 = scmp.ne.s32.totalorder %s297, %s313
      %p315 = scmp.eq.s32.totalorder %s32, 0
      %p316 = por %p314, %p315
      %p317 = scmp.le.s32.totalorder 1, %s26
      %p318 = scmp.lt.s32.totalorder %s26, 3
      %p319 = pnand %p317, %p318
      %p320 = pneg %p319
      // Predicated region
      $region9: #{tpu_custom_call.1} parent=5 // pred_check
        _
      $region10: #{tpu_custom_call.1} parent=5 // pred_check_branch
        %322 = sbr.rel (%p319) target = $region12
      $region11: #{tpu_custom_call.1} parent=5 // pred_region
        %s323 = ssub.s32 %s26, 1
        // Predicated region
        $region13: #{tpu_custom_call.1} parent=11 // pred_check
          %p324 = pneg %p73
        $region14: #{tpu_custom_call.1} parent=11 // pred_check_branch
          %326 = sbr.rel (%p324) target = $region16
        $region15: #{tpu_custom_call.1} parent=11 // pred_region
          _
        $region16: #{tpu_custom_call.1} parent=11 // pred_fallthru
          _
        // Predicated region
        $region17: #{tpu_custom_call.1} parent=11 // pred_check
          %p327 = pneg %p94
        $region18: #{tpu_custom_call.1} parent=11 // pred_check_branch
          %329 = sbr.rel (%p327) target = $region20
        $region19: #{tpu_custom_call.1} parent=11 // pred_region
          %s331 = ssub.s32 512, 512
          %332 = vsyncadd [#allocation6], %s331
          %s333 = sshll.u32 [#allocation5], 4
          %s334 = int_to_ptr.vmem [resolvable:$true] %s333
          %339 = dma.hbm_to_vmem [thread:$0]  %s2, 512, %s334, [#allocation6], 64, 64, 4
        $region20: #{tpu_custom_call.1} parent=11 // pred_fallthru
          _
        // Predicated region
        $region21: #{tpu_custom_call.1} parent=11 // pred_check
          %p340 = pneg %p115
        $region22: #{tpu_custom_call.1} parent=11 // pred_check_branch
          %342 = sbr.rel (%p340) target = $region24
        $region23: #{tpu_custom_call.1} parent=11 // pred_region
          %s344 = ssub.s32 512, 512
          %345 = vsyncadd [#allocation6], %s344
          %s346 = sshll.u32 [#allocation7], 4
          %s347 = int_to_ptr.vmem [resolvable:$true] %s346
          %352 = dma.hbm_to_vmem [thread:$0]  %s3, 512, %s347, [#allocation6], 64, 64, 4
        $region24: #{tpu_custom_call.1} parent=11 // pred_fallthru
          _
        // Predicated region
        $region25: #{tpu_custom_call.1} parent=11 // pred_check
          %p353 = pneg %p136
        $region26: #{tpu_custom_call.1} parent=11 // pred_check_branch
          %355 = sbr.rel (%p353) target = $region28
        $region27: #{tpu_custom_call.1} parent=11 // pred_region
          %s357 = ssub.s32 512, 512
          %358 = vsyncadd [#allocation9], %s357
          %s359 = sshll.u32 [#allocation8], 4
          %s360 = int_to_ptr.vmem [resolvable:$true] %s359
          %365 = dma.hbm_to_vmem [thread:$0]  %s4, 512, %s360, [#allocation9], 64, 64, 4
        $region28: #{tpu_custom_call.1} parent=11 // pred_fallthru
          _
        // Predicated region
        $region29: #{tpu_custom_call.1} parent=11 // pred_check
          %p366 = pneg %p157
        $region30: #{tpu_custom_call.1} parent=11 // pred_check_branch
          %368 = sbr.rel (%p366) target = $region32
        $region31: #{tpu_custom_call.1} parent=11 // pred_region
          _
        $region32: #{tpu_custom_call.1} parent=11 // pred_fallthru
          _
        // Predicated region
        $region33: #{tpu_custom_call.1} parent=11 // pred_check
          %p369 = pneg %p178
        $region34: #{tpu_custom_call.1} parent=11 // pred_check_branch
          %371 = sbr.rel (%p369) target = $region36
        $region35: #{tpu_custom_call.1} parent=11 // pred_region
          _
        $region36: #{tpu_custom_call.1} parent=11 // pred_fallthru
          _
        // Predicated region
        $region37: #{tpu_custom_call.1} parent=11 // pred_check
          %p372 = pneg %p199
        $region38: #{tpu_custom_call.1} parent=11 // pred_check_branch
          %374 = sbr.rel (%p372) target = $region40
        $region39: #{tpu_custom_call.1} parent=11 // pred_region
          _
        $region40: #{tpu_custom_call.1} parent=11 // pred_fallthru
          _
        // Predicated region
        $region41: #{tpu_custom_call.1} parent=11 // pred_check
          %p375 = pneg %p220
        $region42: #{tpu_custom_call.1} parent=11 // pred_check_branch
          %377 = sbr.rel (%p375) target = $region44
        $region43: #{tpu_custom_call.1} parent=11 // pred_region
          _
        $region44: #{tpu_custom_call.1} parent=11 // pred_fallthru
          _
        // Predicated region
        $region45: #{tpu_custom_call.1} parent=11 // pred_check
          %p378 = pneg %p241
        $region46: #{tpu_custom_call.1} parent=11 // pred_check_branch
          %380 = sbr.rel (%p378) target = $region48
        $region47: #{tpu_custom_call.1} parent=11 // pred_region
          _
        $region48: #{tpu_custom_call.1} parent=11 // pred_fallthru
          _
        // Predicated region
        $region49: #{tpu_custom_call.1} parent=11 // pred_check
          %p381 = pneg %p262
        $region50: #{tpu_custom_call.1} parent=11 // pred_check_branch
          %383 = sbr.rel (%p381) target = $region52
        $region51: #{tpu_custom_call.1} parent=11 // pred_region
          _
        $region52: #{tpu_custom_call.1} parent=11 // pred_fallthru
          _
        // Predicated region
        $region53: #{tpu_custom_call.1} parent=11 // pred_check
          %p384 = pneg %p283
        $region54: #{tpu_custom_call.1} parent=11 // pred_check_branch
          %386 = sbr.rel (%p384) target = $region56
        $region55: #{tpu_custom_call.1} parent=11 // pred_region
          _
        $region56: #{tpu_custom_call.1} parent=11 // pred_fallthru
          _
      $region12: #{tpu_custom_call.1} parent=5 // pred_fallthru
        _
      %p387 = scmp.lt.s32.totalorder %s26, 2
      // Predicated region
      $region57: #{tpu_custom_call.1} parent=5 // pred_check
        %p388 = pneg %p387
      $region58: #{tpu_custom_call.1} parent=5 // pred_check_branch
        %390 = sbr.rel (%p388) target = $region60
      $region59: #{tpu_custom_call.1} parent=5 // pred_region
        // Predicated region
        $region61: #{tpu_custom_call.1} parent=59 // pred_check
          %p391 = pneg %p46
        $region62: #{tpu_custom_call.1} parent=59 // pred_check_branch
          %393 = sbr.rel (%p391) target = $region64
        $region63: #{tpu_custom_call.1} parent=59 // pred_region
          %s394 = sand.u32 %s36, 1
          %s395 = scalar_lea.sflag [#allocation3], %s394
          %s396 = sand.u32 %s36, 1
          %s397 = smul.addr %s396, 8
          %s398 = scalar_lea.vmem [#allocation2], %s397
          %s400 = ssub.s32 128, 128
          %401 = vsyncadd %s395, %s400
          %s402 = smul.addr %s26, 128
          %s403 = scalar_lea.hbm %s0, %s402
          %s405 = sshll.u32 %s398, 4
          %s406 = int_to_ptr.vmem [resolvable:$true] %s405
          %408 = dma.hbm_to_vmem [thread:$0]  %s403, 128, %s406, %s395
        $region64: #{tpu_custom_call.1} parent=59 // pred_fallthru
          _
      $region60: #{tpu_custom_call.1} parent=5 // pred_fallthru
        _
      %p409 = scmp.le.s32.totalorder 1, %s26
      %p410 = scmp.lt.s32.totalorder %s26, 3
      %p411 = pnand %p409, %p410
      %p412 = pneg %p411
      // Predicated region
      $region65: #{tpu_custom_call.1} parent=5 // pred_check
        _
      $region66: #{tpu_custom_call.1} parent=5 // pred_check_branch
        %414 = sbr.rel (%p411) target = $region68
      $region67: #{tpu_custom_call.1} parent=5 // pred_region
        %s415 = ssub.s32 %s26, 1
        %s416 = sand.u32 %s39, 1
        %s417 = scalar_lea.sflag [#allocation3], %s416
        %s418 = sand.u32 %s39, 1
        %s419 = smul.addr %s418, 8
        %s420 = scalar_lea.vmem [#allocation2], %s419
        // Predicated region
        $region69: #{tpu_custom_call.1} parent=67 // pred_check
          %p421 = pneg %p52
        $region70: #{tpu_custom_call.1} parent=67 // pred_check_branch
          %423 = sbr.rel (%p421) target = $region72
        $region71: #{tpu_custom_call.1} parent=67 // pred_region
          %424 = dma.done %s417, 128
        $region72: #{tpu_custom_call.1} parent=67 // pred_fallthru
          _
        // Predicated region
        $region73: #{tpu_custom_call.1} parent=67 // pred_check
          %p425 = pneg %p94
        $region74: #{tpu_custom_call.1} parent=67 // pred_check_branch
          %427 = sbr.rel (%p425) target = $region76
        $region75: #{tpu_custom_call.1} parent=67 // pred_region
          %428 = dma.done [#allocation6], 512
        $region76: #{tpu_custom_call.1} parent=67 // pred_fallthru
          _
        // Predicated region
        $region77: #{tpu_custom_call.1} parent=67 // pred_check
          %p429 = pneg %p115
        $region78: #{tpu_custom_call.1} parent=67 // pred_check_branch
          %431 = sbr.rel (%p429) target = $region80
        $region79: #{tpu_custom_call.1} parent=67 // pred_region
          %432 = dma.done [#allocation6], 512
        $region80: #{tpu_custom_call.1} parent=67 // pred_fallthru
          _
        // Predicated region
        $region81: #{tpu_custom_call.1} parent=67 // pred_check
          %p433 = pneg %p136
        $region82: #{tpu_custom_call.1} parent=67 // pred_check_branch
          %435 = sbr.rel (%p433) target = $region84
        $region83: #{tpu_custom_call.1} parent=67 // pred_region
          %436 = dma.done [#allocation9], 512
        $region84: #{tpu_custom_call.1} parent=67 // pred_fallthru
          _
        %s437 = sand.u32 %s39, 1
        %s438 = scalar_lea.sflag [#allocation3], %s437
        %s439 = sand.u32 %s39, 1
        %s440 = smul.addr %s439, 8
        %s441 = scalar_lea.vmem [#allocation2], %s440
        %p442 = pneg %p52
        %p443 = pneg %p49
        %p444 = pneg %p73
        %p445 = pneg %p70
        %p446 = pneg %p94
        %p447 = pneg %p91
        %p448 = pneg %p115
        %p449 = pneg %p112
        %p450 = pneg %p136
        %p451 = pneg %p133
        %p452 = pneg %p157
        %p453 = pneg %p154
        %p454 = pneg %p178
        %p455 = pneg %p175
        %p456 = pneg %p199
        %p457 = pneg %p196
        %p458 = pneg %p220
        %p459 = pneg %p217
        %p460 = pneg %p241
        %p461 = pneg %p238
        %p462 = pneg %p262
        %p463 = pneg %p259
        %p464 = pneg %p283
        %p465 = pneg %p280
        %p466 = pneg %p309
        %p467 = pneg %p306
        %s468 = sand.u32 %s296, 1
        %s469 = scalar_lea.sflag [#allocation4], %s468
        %s470 = sand.u32 %s296, 1
        %s471 = smul.addr %s470, 8
        %s472 = scalar_lea.vmem [#allocation10], %s471
        %v474 = vld [vmem:[%s420] sm:$0xff]
        %v475 = vld [vmem:[%s8] sm:$0x1]
        %v476 = vmul.f32 %v474, %v474
        %vm477 = vcmask 523264
        %v478 = vsel %vm477, %v476, 0.0
        %479 = vadd.xlane.f32.xlu0 %v478
        %v480 = vpop.xlane.xlu0 %479
        %v481 = vrcp.pop 64.0
        %v482 = vmul.f32 %v480, %v481
        %v483 = vadd.f32 %v482, 1e-05
        %v484 = vrsqrt.pop %v483
        %v486 = vlaneseq
        %v487 = vshrl.u32 %v486, 7
        %v488 = vsub.s32 0, %v487
        %v489 = vrot.slane %v475, %v488
        %v491 = vmul.f32 %v484, %v489
        %v492 = vmul.f32 %v474, %v491
        %v493 = vpack.c.bf16 %v492, %v492
        %v494 = vld [vmem:[%s1] sm:$0xf]
        %v495 = vld [vmem:[%s1 + $0x4] sm:$0xf]
        %v496 = vld [vmem:[%s1 + $0x8] sm:$0xf]
        %v497 = vld [vmem:[%s1 + $0xc] sm:$0xf]
        %v498 = vld [vmem:[%s1 + $0x10] sm:$0xf]
        %v499 = vld [vmem:[%s1 + $0x14] sm:$0xf]
        %v500 = vld [vmem:[%s1 + $0x18] sm:$0xf]
        %v501 = vld [vmem:[%s1 + $0x1c] sm:$0xf]
        %v510 = vunpack.c.l.b16 %v494
        %v511 = vunpack.c.l.b16 %v495
        %v512 = vunpack.c.l.b16 %v496
        %v513 = vunpack.c.l.b16 %v497
        %v514 = vunpack.c.l.b16 %v498
        %v515 = vunpack.c.l.b16 %v499
        %v516 = vunpack.c.l.b16 %v500
        %v517 = vunpack.c.l.b16 %v501
        %v518 = vpack.c.b16 %v511, %v510
        %v519 = vpack.c.b16 %v513, %v512
        %v520 = vpack.c.b16 %v515, %v514
        %v521 = vpack.c.b16 %v517, %v516
        %v527 = vsel %vm477, %v493, 0
        %529 = vmatprep.subr.bf16.mxu0 0
        %530 = vmatpush1.bf16.msra.mxu0 %v518
        %531 = vmatprep.subr.bf16.mxu0 0
        %532 = vmatpush1.bf16.msra.mxu0 %v519
        %533 = vmatprep.subr.bf16.mxu0 0
        %534 = vmatpush1.bf16.msra.mxu0 %v520
        %535 = vmatprep.subr.bf16.mxu0 0
        %536 = vmatpush1.bf16.msra.mxu0 %v521
        %537 = vmatprep.subr.bf16.mxu0 0
        %538 = vmatpush1.bf16.msra.mxu0 0
        %539 = vmatprep.subr.bf16.mxu0 0
        %540 = vmatpush1.bf16.msra.mxu0 0
        %541 = vmatprep.subr.bf16.mxu0 0
        %542 = vmatpush1.bf16.msra.mxu0 0
        %543 = vmatprep.subr.bf16.mxu0 0
        %544 = vmatpush1.bf16.msra.mxu0 0
        %545 = vmatprep.subr.bf16.mxu0 0
        %546 = vmatpush1.bf16.msra.mxu0 0
        %547 = vmatprep.subr.bf16.mxu0 0
        %548 = vmatpush1.bf16.msra.mxu0 0
        %549 = vmatprep.subr.bf16.mxu0 0
        %550 = vmatpush1.bf16.msra.mxu0 0
        %551 = vmatprep.subr.bf16.mxu0 0
        %552 = vmatpush1.bf16.msra.mxu0 0
        %553 = vmatprep.subr.bf16.mxu0 0
        %554 = vmatpush1.bf16.msra.mxu0 0
        %555 = vmatprep.subr.bf16.mxu0 0
        %556 = vmatpush1.bf16.msra.mxu0 0
        %557 = vmatprep.subr.bf16.mxu0 0
        %558 = vmatpush1.bf16.msra.mxu0 0
        %559 = vmatprep.subr.bf16.mxu0 0
        %560 = vmatpush1.bf16.msra.mxu0 0
        %561 = vmatprep.mubr.bf16.mxu0 0
        %562 = vmatmul.mubr.bf16.gmra.mrb[0].mxu0 %v527
        %v563 = vpop.f32.mrb[0].mxu0
        %v564 = vadd.f32 0.0, %v563
        %v565 = vpop.f32.mrb[0].mxu0
        %v566 = vpop.f32.mrb[0].mxu0
        %v567 = vpop.f32.mrb[0].mxu0
        %568 = vdwg.mxu0
        %v569 = vld [vmem:[#allocation5] sm:$0xf]
        %v570 = vld [vmem:[#allocation5 + $0x4] sm:$0xf]
        %v571 = vld [vmem:[#allocation5 + $0x8] sm:$0xf]
        %v572 = vld [vmem:[#allocation5 + $0xc] sm:$0xf]
        %v573 = vld [vmem:[#allocation5 + $0x10] sm:$0xf]
        %v574 = vld [vmem:[#allocation5 + $0x14] sm:$0xf]
        %v575 = vld [vmem:[#allocation5 + $0x18] sm:$0xf]
        %v576 = vld [vmem:[#allocation5 + $0x1c] sm:$0xf]
        %v585 = vunpack.c.l.b16 %v569
        %v586 = vunpack.c.l.b16 %v570
        %v587 = vunpack.c.l.b16 %v571
        %v588 = vunpack.c.l.b16 %v572
        %v589 = vunpack.c.l.b16 %v573
        %v590 = vunpack.c.l.b16 %v574
        %v591 = vunpack.c.l.b16 %v575
        %v592 = vunpack.c.l.b16 %v576
        %v593 = vpack.c.b16 %v586, %v585
        %v594 = vpack.c.b16 %v588, %v587
        %v595 = vpack.c.b16 %v590, %v589
        %v596 = vpack.c.b16 %v592, %v591
        %601 = vmatprep.subr.bf16.mxu0 0
        %602 = vmatpush1.bf16.msra.mxu0 %v593
        %603 = vmatprep.subr.bf16.mxu0 0
        %604 = vmatpush1.bf16.msra.mxu0 %v594
        %605 = vmatprep.subr.bf16.mxu0 0
        %606 = vmatpush1.bf16.msra.mxu0 %v595
        %607 = vmatprep.subr.bf16.mxu0 0
        %608 = vmatpush1.bf16.msra.mxu0 %v596
        %609 = vmatprep.subr.bf16.mxu0 0
        %610 = vmatpush1.bf16.msra.mxu0 0
        %611 = vmatprep.subr.bf16.mxu0 0
        %612 = vmatpush1.bf16.msra.mxu0 0
        %613 = vmatprep.subr.bf16.mxu0 0
        %614 = vmatpush1.bf16.msra.mxu0 0
        %615 = vmatprep.subr.bf16.mxu0 0
        %616 = vmatpush1.bf16.msra.mxu0 0
        %617 = vmatprep.subr.bf16.mxu0 0
        %618 = vmatpush1.bf16.msra.mxu0 0
        %619 = vmatprep.subr.bf16.mxu0 0
        %620 = vmatpush1.bf16.msra.mxu0 0
        %621 = vmatprep.subr.bf16.mxu0 0
        %622 = vmatpush1.bf16.msra.mxu0 0
        %623 = vmatprep.subr.bf16.mxu0 0
        %624 = vmatpush1.bf16.msra.mxu0 0
        %625 = vmatprep.subr.bf16.mxu0 0
        %626 = vmatpush1.bf16.msra.mxu0 0
        %627 = vmatprep.subr.bf16.mxu0 0
        %628 = vmatpush1.bf16.msra.mxu0 0
        %629 = vmatprep.subr.bf16.mxu0 0
        %630 = vmatpush1.bf16.msra.mxu0 0
        %631 = vmatprep.subr.bf16.mxu0 0
        %632 = vmatpush1.bf16.msra.mxu0 0
        %633 = vmatprep.mubr.bf16.mxu0 0
        %634 = vmatmul.mubr.bf16.gmra.mrb[0].mxu0 %v527
        %v635 = vpop.f32.mrb[0].mxu0
        %v636 = vadd.f32 0.0, %v635
        %v637 = vpop.f32.mrb[0].mxu0
        %v638 = vpop.f32.mrb[0].mxu0
        %v639 = vpop.f32.mrb[0].mxu0
        %640 = vdwg.mxu0
        %v641 = vld [vmem:[#allocation7] sm:$0xf]
        %v642 = vld [vmem:[#allocation7 + $0x4] sm:$0xf]
        %v643 = vld [vmem:[#allocation7 + $0x8] sm:$0xf]
        %v644 = vld [vmem:[#allocation7 + $0xc] sm:$0xf]
        %v645 = vld [vmem:[#allocation7 + $0x10] sm:$0xf]
        %v646 = vld [vmem:[#allocation7 + $0x14] sm:$0xf]
        %v647 = vld [vmem:[#allocation7 + $0x18] sm:$0xf]
        %v648 = vld [vmem:[#allocation7 + $0x1c] sm:$0xf]
        %v657 = vunpack.c.l.b16 %v641
        %v658 = vunpack.c.l.b16 %v642
        %v659 = vunpack.c.l.b16 %v643
        %v660 = vunpack.c.l.b16 %v644
        %v661 = vunpack.c.l.b16 %v645
        %v662 = vunpack.c.l.b16 %v646
        %v663 = vunpack.c.l.b16 %v647
        %v664 = vunpack.c.l.b16 %v648
        %v665 = vpack.c.b16 %v658, %v657
        %v666 = vpack.c.b16 %v660, %v659
        %v667 = vpack.c.b16 %v662, %v661
        %v668 = vpack.c.b16 %v664, %v663
        %673 = vmatprep.subr.bf16.mxu0 0
        %674 = vmatpush1.bf16.msra.mxu0 %v665
        %675 = vmatprep.subr.bf16.mxu0 0
        %676 = vmatpush1.bf16.msra.mxu0 %v666
        %677 = vmatprep.subr.bf16.mxu0 0
        %678 = vmatpush1.bf16.msra.mxu0 %v667
        %679 = vmatprep.subr.bf16.mxu0 0
        %680 = vmatpush1.bf16.msra.mxu0 %v668
        %681 = vmatprep.subr.bf16.mxu0 0
        %682 = vmatpush1.bf16.msra.mxu0 0
        %683 = vmatprep.subr.bf16.mxu0 0
        %684 = vmatpush1.bf16.msra.mxu0 0
        %685 = vmatprep.subr.bf16.mxu0 0
        %686 = vmatpush1.bf16.msra.mxu0 0
        %687 = vmatprep.subr.bf16.mxu0 0
        %688 = vmatpush1.bf16.msra.mxu0 0
        %689 = vmatprep.subr.bf16.mxu0 0
        %690 = vmatpush1.bf16.msra.mxu0 0
        %691 = vmatprep.subr.bf16.mxu0 0
        %692 = vmatpush1.bf16.msra.mxu0 0
        %693 = vmatprep.subr.bf16.mxu0 0
        %694 = vmatpush1.bf16.msra.mxu0 0
        %695 = vmatprep.subr.bf16.mxu0 0
        %696 = vmatpush1.bf16.msra.mxu0 0
        %697 = vmatprep.subr.bf16.mxu0 0
        %698 = vmatpush1.bf16.msra.mxu0 0
        %699 = vmatprep.subr.bf16.mxu0 0
        %700 = vmatpush1.bf16.msra.mxu0 0
        %701 = vmatprep.subr.bf16.mxu0 0
        %702 = vmatpush1.bf16.msra.mxu0 0
        %703 = vmatprep.subr.bf16.mxu0 0
        %704 = vmatpush1.bf16.msra.mxu0 0
        %705 = vmatprep.mubr.bf16.mxu0 0
        %706 = vmatmul.mubr.bf16.gmra.mrb[0].mxu0 %v527
        %v707 = vpop.f32.mrb[0].mxu0
        %v708 = vadd.f32 0.0, %v707
        %v709 = vpop.f32.mrb[0].mxu0
        %v710 = vpop.f32.mrb[0].mxu0
        %v711 = vpop.f32.mrb[0].mxu0
        %712 = vdwg.mxu0
        %v713 = vpack.c.bf16 %v708, %v708
        %v714 = vld [vmem:[%s10] sm:$0xff]
        %v715 = vld [vmem:[%s11] sm:$0xff]
        %v716 = vlaneseq
        %v717 = vshrl.u32 %v716, 7
        %v718 = vlaneseq
        %v719 = vand.u32 %v718, 127
        %vm720 = vcmp.le.s32.totalorder %v719, %v717
        %v721 = vmul.f32 %v564, %v714
        %723 = vrot.lane.b32.xlu0 %v715, 8
        %v724 = vpop.permute.xlu0 %723
        %v726 = vmul.f32 %v564, %v724
        %728 = vrot.lane.b32.xlu0 %v726, 120
        %v729 = vpop.permute.xlu0 %728
        %v731 = vsub.f32 %v721, %v729
        %733 = vrot.lane.b32.xlu0 %v714, 8
        %v734 = vpop.permute.xlu0 %733
        %v736 = vmul.f32 %v564, %v734
        %v737 = vmul.f32 %v564, %v715
        %739 = vrot.lane.b32.xlu0 %v737, 8
        %v740 = vpop.permute.xlu0 %739
        %v742 = vadd.f32 %v736, %v740
        %vm743 = vcmask 64512
        %v744 = vsel %vm743, %v731, %v742
        %v745 = vmul.f32 %v744, 0.25
        %v746 = vmul.f32 %v636, %v714
        %v747 = vmul.f32 %v636, %v724
        %749 = vrot.lane.b32.xlu0 %v747, 120
        %v750 = vpop.permute.xlu0 %749
        %v752 = vsub.f32 %v746, %v750
        %v753 = vmul.f32 %v636, %v734
        %v754 = vmul.f32 %v636, %v715
        %756 = vrot.lane.b32.xlu0 %v754, 8
        %v757 = vpop.permute.xlu0 %756
        %v759 = vadd.f32 %v753, %v757
        %v760 = vsel %vm743, %v752, %v759
        %v761 = vpack.c.bf16 %v745, %v745
        %v762 = vpack.c.bf16 %v760, %v760
        %vm763 = vcmask 130048
        %v765 = vsel %vm763, %v761, 0
        %v768 = vsel %vm763, %v762, 0
        %770 = vmatprep.subr.bf16.mxu0 0
        %771 = vmatpush1.bf16.xpose.msra.mxu0 %v768
        %772 = vmatprep.subr.bf16.mxu0 0
        %773 = vmatpush1.bf16.xpose.msra.mxu0 0
        %774 = vmatprep.subr.bf16.mxu0 0
        %775 = vmatpush1.bf16.xpose.msra.mxu0 0
        %776 = vmatprep.subr.bf16.mxu0 0
        %777 = vmatpush1.bf16.xpose.msra.mxu0 0
        %778 = vmatprep.subr.bf16.mxu0 0
        %779 = vmatpush1.bf16.xpose.msra.mxu0 0
        %780 = vmatprep.subr.bf16.mxu0 0
        %781 = vmatpush1.bf16.xpose.msra.mxu0 0
        %782 = vmatprep.subr.bf16.mxu0 0
        %783 = vmatpush1.bf16.xpose.msra.mxu0 0
        %784 = vmatprep.subr.bf16.mxu0 0
        %785 = vmatpush1.bf16.xpose.msra.mxu0 0
        %786 = vmatprep.subr.bf16.mxu0 0
        %787 = vmatpush1.bf16.xpose.msra.mxu0 0
        %788 = vmatprep.subr.bf16.mxu0 0
        %789 = vmatpush1.bf16.xpose.msra.mxu0 0
        %790 = vmatprep.subr.bf16.mxu0 0
        %791 = vmatpush1.bf16.xpose.msra.mxu0 0
        %792 = vmatprep.subr.bf16.mxu0 0
        %793 = vmatpush1.bf16.xpose.msra.mxu0 0
        %794 = vmatprep.subr.bf16.mxu0 0
        %795 = vmatpush1.bf16.xpose.msra.mxu0 0
        %796 = vmatprep.subr.bf16.mxu0 0
        %797 = vmatpush1.bf16.xpose.msra.mxu0 0
        %798 = vmatprep.subr.bf16.mxu0 0
        %799 = vmatpush1.bf16.xpose.msra.mxu0 0
        %800 = vmatprep.subr.bf16.mxu0 0
        %801 = vmatpush1.bf16.xpose.msra.mxu0 0
        %802 = vmatprep.mubr.bf16.mxu0 0
        %803 = vmatmul.mubr.bf16.gmra.mrb[0].mxu0 %v765
        %v804 = vpop.f32.mrb[0].mxu0
        %v805 = vadd.f32 0.0, %v804
        %v806 = vpop.f32.mrb[0].mxu0
        %v807 = vpop.f32.mrb[0].mxu0
        %v808 = vpop.f32.mrb[0].mxu0
        %809 = vdwg.mxu0
        %v810 = vsel %vm720, %v805, -inf
        %v811 = vsel %vm743, %v810, -inf
        %812 = vmax.xlane.f32.xlu0 %v811
        %v813 = vpop.xlane.xlu0 %812
        %v814 = vsub.f32 %v810, %v813
        %v815 = vmul.f32 %v814, 1.442695
        %v816 = vpow.pop %v815
        %v817 = vsel %vm743, %v816, 0.0
        %818 = vadd.xlane.f32.xlu0 %v817
        %v819 = vpop.xlane.xlu0 %818
        %v820 = vrcp.pop %v819
        %v821 = vmul.f32 %v816, %v820
        %v822 = vpack.c.bf16 %v821, %v821
        %v824 = vsel %vm743, %v822, 0
        %vm826 = vcmask 1043456
        %v828 = vsel %vm826, %v713, 0
        %830 = vmatprep.subr.bf16.mxu0 0
        %831 = vmatpush1.bf16.msra.mxu0 %v828
        %832 = vmatprep.subr.bf16.mxu0 0
        %833 = vmatpush1.bf16.msra.mxu0 0
        %834 = vmatprep.subr.bf16.mxu0 0
        %835 = vmatpush1.bf16.msra.mxu0 0
        %836 = vmatprep.subr.bf16.mxu0 0
        %837 = vmatpush1.bf16.msra.mxu0 0
        %838 = vmatprep.subr.bf16.mxu0 0
        %839 = vmatpush1.bf16.msra.mxu0 0
        %840 = vmatprep.subr.bf16.mxu0 0
        %841 = vmatpush1.bf16.msra.mxu0 0
        %842 = vmatprep.subr.bf16.mxu0 0
        %843 = vmatpush1.bf16.msra.mxu0 0
        %844 = vmatprep.subr.bf16.mxu0 0
        %845 = vmatpush1.bf16.msra.mxu0 0
        %846 = vmatprep.subr.bf16.mxu0 0
        %847 = vmatpush1.bf16.msra.mxu0 0
        %848 = vmatprep.subr.bf16.mxu0 0
        %849 = vmatpush1.bf16.msra.mxu0 0
        %850 = vmatprep.subr.bf16.mxu0 0
        %851 = vmatpush1.bf16.msra.mxu0 0
        %852 = vmatprep.subr.bf16.mxu0 0
        %853 = vmatpush1.bf16.msra.mxu0 0
        %854 = vmatprep.subr.bf16.mxu0 0
        %855 = vmatpush1.bf16.msra.mxu0 0
        %856 = vmatprep.subr.bf16.mxu0 0
        %857 = vmatpush1.bf16.msra.mxu0 0
        %858 = vmatprep.subr.bf16.mxu0 0
        %859 = vmatpush1.bf16.msra.mxu0 0
        %860 = vmatprep.subr.bf16.mxu0 0
        %861 = vmatpush1.bf16.msra.mxu0 0
        %862 = vmatprep.mubr.bf16.mxu0 0
        %863 = vmatmul.mubr.bf16.gmra.mrb[0].mxu0 %v824
        %v864 = vpop.f32.mrb[0].mxu0
        %v865 = vadd.f32 0.0, %v864
        %v866 = vpop.f32.mrb[0].mxu0
        %v867 = vpop.f32.mrb[0].mxu0
        %v868 = vpop.f32.mrb[0].mxu0
        %869 = vdwg.mxu0
        %870 = vrot.lane.b32.xlu0 %v714, 16
        %v871 = vpop.permute.xlu0 %870
        %v873 = vmul.f32 %v564, %v871
        %874 = vrot.lane.b32.xlu0 %v715, 24
        %v875 = vpop.permute.xlu0 %874
        %v877 = vmul.f32 %v564, %v875
        %879 = vrot.lane.b32.xlu0 %v877, 120
        %v880 = vpop.permute.xlu0 %879
        %v882 = vsub.f32 %v873, %v880
        %883 = vrot.lane.b32.xlu0 %v714, 24
        %v884 = vpop.permute.xlu0 %883
        %v886 = vmul.f32 %v564, %v884
        %887 = vrot.lane.b32.xlu0 %v715, 16
        %v888 = vpop.permute.xlu0 %887
        %v890 = vmul.f32 %v564, %v888
        %892 = vrot.lane.b32.xlu0 %v890, 8
        %v893 = vpop.permute.xlu0 %892
        %v895 = vadd.f32 %v886, %v893
        %897 = vrot.lane.b32.xlu0 %v882, 112
        %v898 = vpop.permute.xlu0 %897
        %901 = vrot.lane.b32.xlu0 %v895, 112
        %v902 = vpop.permute.xlu0 %901
        %v904 = vsel %vm743, %v898, %v902
        %v905 = vmul.f32 %v904, 0.25
        %v906 = vmul.f32 %v636, %v871
        %v907 = vmul.f32 %v636, %v875
        %909 = vrot.lane.b32.xlu0 %v907, 120
        %v910 = vpop.permute.xlu0 %909
        %v912 = vsub.f32 %v906, %v910
        %v913 = vmul.f32 %v636, %v884
        %v914 = vmul.f32 %v636, %v888
        %916 = vrot.lane.b32.xlu0 %v914, 8
        %v917 = vpop.permute.xlu0 %916
        %v919 = vadd.f32 %v913, %v917
        %921 = vrot.lane.b32.xlu0 %v912, 112
        %v922 = vpop.permute.xlu0 %921
        %925 = vrot.lane.b32.xlu0 %v919, 112
        %v926 = vpop.permute.xlu0 %925
        %v928 = vsel %vm743, %v922, %v926
        %v929 = vpack.c.bf16 %v905, %v905
        %v930 = vpack.c.bf16 %v928, %v928
        %v932 = vsel %vm763, %v929, 0
        %v935 = vsel %vm763, %v930, 0
        %937 = vmatprep.subr.bf16.mxu0 0
        %938 = vmatpush1.bf16.xpose.msra.mxu0 %v935
        %939 = vmatprep.subr.bf16.mxu0 0
        %940 = vmatpush1.bf16.xpose.msra.mxu0 0
        %941 = vmatprep.subr.bf16.mxu0 0
        %942 = vmatpush1.bf16.xpose.msra.mxu0 0
        %943 = vmatprep.subr.bf16.mxu0 0
        %944 = vmatpush1.bf16.xpose.msra.mxu0 0
        %945 = vmatprep.subr.bf16.mxu0 0
        %946 = vmatpush1.bf16.xpose.msra.mxu0 0
        %947 = vmatprep.subr.bf16.mxu0 0
        %948 = vmatpush1.bf16.xpose.msra.mxu0 0
        %949 = vmatprep.subr.bf16.mxu0 0
        %950 = vmatpush1.bf16.xpose.msra.mxu0 0
        %951 = vmatprep.subr.bf16.mxu0 0
        %952 = vmatpush1.bf16.xpose.msra.mxu0 0
        %953 = vmatprep.subr.bf16.mxu0 0
        %954 = vmatpush1.bf16.xpose.msra.mxu0 0
        %955 = vmatprep.subr.bf16.mxu0 0
        %956 = vmatpush1.bf16.xpose.msra.mxu0 0
        %957 = vmatprep.subr.bf16.mxu0 0
        %958 = vmatpush1.bf16.xpose.msra.mxu0 0
        %959 = vmatprep.subr.bf16.mxu0 0
        %960 = vmatpush1.bf16.xpose.msra.mxu0 0
        %961 = vmatprep.subr.bf16.mxu0 0
        %962 = vmatpush1.bf16.xpose.msra.mxu0 0
        %963 = vmatprep.subr.bf16.mxu0 0
        %964 = vmatpush1.bf16.xpose.msra.mxu0 0
        %965 = vmatprep.subr.bf16.mxu0 0
        %966 = vmatpush1.bf16.xpose.msra.mxu0 0
        %967 = vmatprep.subr.bf16.mxu0 0
        %968 = vmatpush1.bf16.xpose.msra.mxu0 0
        %969 = vmatprep.mubr.bf16.mxu0 0
        %970 = vmatmul.mubr.bf16.gmra.mrb[0].mxu0 %v932
        %v971 = vpop.f32.mrb[0].mxu0
        %v972 = vadd.f32 0.0, %v971
        %v973 = vpop.f32.mrb[0].mxu0
        %v974 = vpop.f32.mrb[0].mxu0
        %v975 = vpop.f32.mrb[0].mxu0
        %976 = vdwg.mxu0
        %v977 = vsel %vm720, %v972, -inf
        %v978 = vsel %vm743, %v977, -inf
        %979 = vmax.xlane.f32.xlu0 %v978
        %v980 = vpop.xlane.xlu0 %979
        %v981 = vsub.f32 %v977, %v980
        %v982 = vmul.f32 %v981, 1.442695
        %v983 = vpow.pop %v982
        %v984 = vsel %vm743, %v983, 0.0
        %985 = vadd.xlane.f32.xlu0 %v984
        %v986 = vpop.xlane.xlu0 %985
        %v987 = vrcp.pop %v986
        %v988 = vmul.f32 %v983, %v987
        %v989 = vpack.c.bf16 %v988, %v988
        %991 = vrot.lane.b32.xlu0 %v713, 112
        %v992 = vpop.permute.xlu0 %991
        %v994 = vsel %vm743, %v989, 0
        %v997 = vsel %vm826, %v992, 0
        %999 = vmatprep.subr.bf16.mxu0 0
        %1000 = vmatpush1.bf16.msra.mxu0 %v997
        %1001 = vmatprep.subr.bf16.mxu0 0
        %1002 = vmatpush1.bf16.msra.mxu0 0
        %1003 = vmatprep.subr.bf16.mxu0 0
        %1004 = vmatpush1.bf16.msra.mxu0 0
        %1005 = vmatprep.subr.bf16.mxu0 0
        %1006 = vmatpush1.bf16.msra.mxu0 0
        %1007 = vmatprep.subr.bf16.mxu0 0
        %1008 = vmatpush1.bf16.msra.mxu0 0
        %1009 = vmatprep.subr.bf16.mxu0 0
        %1010 = vmatpush1.bf16.msra.mxu0 0
        %1011 = vmatprep.subr.bf16.mxu0 0
        %1012 = vmatpush1.bf16.msra.mxu0 0
        %1013 = vmatprep.subr.bf16.mxu0 0
        %1014 = vmatpush1.bf16.msra.mxu0 0
        %1015 = vmatprep.subr.bf16.mxu0 0
        %1016 = vmatpush1.bf16.msra.mxu0 0
        %1017 = vmatprep.subr.bf16.mxu0 0
        %1018 = vmatpush1.bf16.msra.mxu0 0
        %1019 = vmatprep.subr.bf16.mxu0 0
        %1020 = vmatpush1.bf16.msra.mxu0 0
        %1021 = vmatprep.subr.bf16.mxu0 0
        %1022 = vmatpush1.bf16.msra.mxu0 0
        %1023 = vmatprep.subr.bf16.mxu0 0
        %1024 = vmatpush1.bf16.msra.mxu0 0
        %1025 = vmatprep.subr.bf16.mxu0 0
        %1026 = vmatpush1.bf16.msra.mxu0 0
        %1027 = vmatprep.subr.bf16.mxu0 0
        %1028 = vmatpush1.bf16.msra.mxu0 0
        %1029 = vmatprep.subr.bf16.mxu0 0
        %1030 = vmatpush1.bf16.msra.mxu0 0
        %1031 = vmatprep.mubr.bf16.mxu0 0
        %1032 = vmatmul.mubr.bf16.gmra.mrb[0].mxu0 %v994
        %v1033 = vpop.f32.mrb[0].mxu0
        %v1034 = vadd.f32 0.0, %v1033
        %v1035 = vpop.f32.mrb[0].mxu0
        %v1036 = vpop.f32.mrb[0].mxu0
        %v1037 = vpop.f32.mrb[0].mxu0
        %1038 = vdwg.mxu0
        %1039 = vrot.lane.b32.xlu0 %v714, 32
        %v1040 = vpop.permute.xlu0 %1039
        %v1042 = vmul.f32 %v564, %v1040
        %1043 = vrot.lane.b32.xlu0 %v715, 40
        %v1044 = vpop.permute.xlu0 %1043
        %v1046 = vmul.f32 %v564, %v1044
        %1048 = vrot.lane.b32.xlu0 %v1046, 120
        %v1049 = vpop.permute.xlu0 %1048
        %v1051 = vsub.f32 %v1042, %v1049
        %1052 = vrot.lane.b32.xlu0 %v714, 40
        %v1053 = vpop.permute.xlu0 %1052
        %v1055 = vmul.f32 %v564, %v1053
        %1056 = vrot.lane.b32.xlu0 %v715, 32
        %v1057 = vpop.permute.xlu0 %1056
        %v1059 = vmul.f32 %v564, %v1057
        %1061 = vrot.lane.b32.xlu0 %v1059, 8
        %v1062 = vpop.permute.xlu0 %1061
        %v1064 = vadd.f32 %v1055, %v1062
        %1066 = vrot.lane.b32.xlu0 %v1051, 96
        %v1067 = vpop.permute.xlu0 %1066
        %1070 = vrot.lane.b32.xlu0 %v1064, 96
        %v1071 = vpop.permute.xlu0 %1070
        %v1073 = vsel %vm743, %v1067, %v1071
        %v1074 = vmul.f32 %v1073, 0.25
        %v1075 = vmul.f32 %v636, %v1040
        %v1076 = vmul.f32 %v636, %v1044
        %1078 = vrot.lane.b32.xlu0 %v1076, 120
        %v1079 = vpop.permute.xlu0 %1078
        %v1081 = vsub.f32 %v1075, %v1079
        %v1082 = vmul.f32 %v636, %v1053
        %v1083 = vmul.f32 %v636, %v1057
        %1085 = vrot.lane.b32.xlu0 %v1083, 8
        %v1086 = vpop.permute.xlu0 %1085
        %v1088 = vadd.f32 %v1082, %v1086
        %1090 = vrot.lane.b32.xlu0 %v1081, 96
        %v1091 = vpop.permute.xlu0 %1090
        %1094 = vrot.lane.b32.xlu0 %v1088, 96
        %v1095 = vpop.permute.xlu0 %1094
        %v1097 = vsel %vm743, %v1091, %v1095
        %v1098 = vpack.c.bf16 %v1074, %v1074
        %v1099 = vpack.c.bf16 %v1097, %v1097
        %v1101 = vsel %vm763, %v1098, 0
        %v1104 = vsel %vm763, %v1099, 0
        %1106 = vmatprep.subr.bf16.mxu0 0
        %1107 = vmatpush1.bf16.xpose.msra.mxu0 %v1104
        %1108 = vmatprep.subr.bf16.mxu0 0
        %1109 = vmatpush1.bf16.xpose.msra.mxu0 0
        %1110 = vmatprep.subr.bf16.mxu0 0
        %1111 = vmatpush1.bf16.xpose.msra.mxu0 0
        %1112 = vmatprep.subr.bf16.mxu0 0
        %1113 = vmatpush1.bf16.xpose.msra.mxu0 0
        %1114 = vmatprep.subr.bf16.mxu0 0
        %1115 = vmatpush1.bf16.xpose.msra.mxu0 0
        %1116 = vmatprep.subr.bf16.mxu0 0
        %1117 = vmatpush1.bf16.xpose.msra.mxu0 0
        %1118 = vmatprep.subr.bf16.mxu0 0
        %1119 = vmatpush1.bf16.xpose.msra.mxu0 0
        %1120 = vmatprep.subr.bf16.mxu0 0
        %1121 = vmatpush1.bf16.xpose.msra.mxu0 0
        %1122 = vmatprep.subr.bf16.mxu0 0
        %1123 = vmatpush1.bf16.xpose.msra.mxu0 0
        %1124 = vmatprep.subr.bf16.mxu0 0
        %1125 = vmatpush1.bf16.xpose.msra.mxu0 0
        %1126 = vmatprep.subr.bf16.mxu0 0
        %1127 = vmatpush1.bf16.xpose.msra.mxu0 0
        %1128 = vmatprep.subr.bf16.mxu0 0
        %1129 = vmatpush1.bf16.xpose.msra.mxu0 0
        %1130 = vmatprep.subr.bf16.mxu0 0
        %1131 = vmatpush1.bf16.xpose.msra.mxu0 0
        %1132 = vmatprep.subr.bf16.mxu0 0
        %1133 = vmatpush1.bf16.xpose.msra.mxu0 0
        %1134 = vmatprep.subr.bf16.mxu0 0
        %1135 = vmatpush1.bf16.xpose.msra.mxu0 0
        %1136 = vmatprep.subr.bf16.mxu0 0
        %1137 = vmatpush1.bf16.xpose.msra.mxu0 0
        %1138 = vmatprep.mubr.bf16.mxu0 0
        %1139 = vmatmul.mubr.bf16.gmra.mrb[0].mxu0 %v1101
        %v1140 = vpop.f32.mrb[0].mxu0
        %v1141 = vadd.f32 0.0, %v1140
        %v1142 = vpop.f32.mrb[0].mxu0
        %v1143 = vpop.f32.mrb[0].mxu0
        %v1144 = vpop.f32.mrb[0].mxu0
        %1145 = vdwg.mxu0
        %v1146 = vsel %vm720, %v1141, -inf
        %v1147 = vsel %vm743, %v1146, -inf
        %1148 = vmax.xlane.f32.xlu0 %v1147
        %v1149 = vpop.xlane.xlu0 %1148
        %v1150 = vsub.f32 %v1146, %v1149
        %v1151 = vmul.f32 %v1150, 1.442695
        %v1152 = vpow.pop %v1151
        %v1153 = vsel %vm743, %v1152, 0.0
        %1154 = vadd.xlane.f32.xlu0 %v1153
        %v1155 = vpop.xlane.xlu0 %1154
        %v1156 = vrcp.pop %v1155
        %v1157 = vmul.f32 %v1152, %v1156
        %v1158 = vpack.c.bf16 %v1157, %v1157
        %1159 = vrot.lane.b32.xlu0 %v713, 96
        %v1160 = vpop.permute.xlu0 %1159
        %v1162 = vsel %vm743, %v1158, 0
        %v1165 = vsel %vm826, %v1160, 0
        %1167 = vmatprep.subr.bf16.mxu0 0
        %1168 = vmatpush1.bf16.msra.mxu0 %v1165
        %1169 = vmatprep.subr.bf16.mxu0 0
        %1170 = vmatpush1.bf16.msra.mxu0 0
        %1171 = vmatprep.subr.bf16.mxu0 0
        %1172 = vmatpush1.bf16.msra.mxu0 0
        %1173 = vmatprep.subr.bf16.mxu0 0
        %1174 = vmatpush1.bf16.msra.mxu0 0
        %1175 = vmatprep.subr.bf16.mxu0 0
        %1176 = vmatpush1.bf16.msra.mxu0 0
        %1177 = vmatprep.subr.bf16.mxu0 0
        %1178 = vmatpush1.bf16.msra.mxu0 0
        %1179 = vmatprep.subr.bf16.mxu0 0
        %1180 = vmatpush1.bf16.msra.mxu0 0
        %1181 = vmatprep.subr.bf16.mxu0 0
        %1182 = vmatpush1.bf16.msra.mxu0 0
        %1183 = vmatprep.subr.bf16.mxu0 0
        %1184 = vmatpush1.bf16.msra.mxu0 0
        %1185 = vmatprep.subr.bf16.mxu0 0
        %1186 = vmatpush1.bf16.msra.mxu0 0
        %1187 = vmatprep.subr.bf16.mxu0 0
        %1188 = vmatpush1.bf16.msra.mxu0 0
        %1189 = vmatprep.subr.bf16.mxu0 0
        %1190 = vmatpush1.bf16.msra.mxu0 0
        %1191 = vmatprep.subr.bf16.mxu0 0
        %1192 = vmatpush1.bf16.msra.mxu0 0
        %1193 = vmatprep.subr.bf16.mxu0 0
        %1194 = vmatpush1.bf16.msra.mxu0 0
        %1195 = vmatprep.subr.bf16.mxu0 0
        %1196 = vmatpush1.bf16.msra.mxu0 0
        %1197 = vmatprep.subr.bf16.mxu0 0
        %1198 = vmatpush1.bf16.msra.mxu0 0
        %1199 = vmatprep.mubr.bf16.mxu0 0
        %1200 = vmatmul.mubr.bf16.gmra.mrb[0].mxu0 %v1162
        %v1201 = vpop.f32.mrb[0].mxu0
        %v1202 = vadd.f32 0.0, %v1201
        %v1203 = vpop.f32.mrb[0].mxu0
        %v1204 = vpop.f32.mrb[0].mxu0
        %v1205 = vpop.f32.mrb[0].mxu0
        %1206 = vdwg.mxu0
        %1207 = vrot.lane.b32.xlu0 %v714, 48
        %v1208 = vpop.permute.xlu0 %1207
        %v1210 = vmul.f32 %v564, %v1208
        %1211 = vrot.lane.b32.xlu0 %v715, 56
        %v1212 = vpop.permute.xlu0 %1211
        %v1214 = vmul.f32 %v564, %v1212
        %1216 = vrot.lane.b32.xlu0 %v1214, 120
        %v1217 = vpop.permute.xlu0 %1216
        %v1219 = vsub.f32 %v1210, %v1217
        %1220 = vrot.lane.b32.xlu0 %v714, 56
        %v1221 = vpop.permute.xlu0 %1220
        %v1223 = vmul.f32 %v564, %v1221
        %1224 = vrot.lane.b32.xlu0 %v715, 48
        %v1225 = vpop.permute.xlu0 %1224
        %v1227 = vmul.f32 %v564, %v1225
        %1229 = vrot.lane.b32.xlu0 %v1227, 8
        %v1230 = vpop.permute.xlu0 %1229
        %v1232 = vadd.f32 %v1223, %v1230
        %1234 = vrot.lane.b32.xlu0 %v1219, 80
        %v1235 = vpop.permute.xlu0 %1234
        %1238 = vrot.lane.b32.xlu0 %v1232, 80
        %v1239 = vpop.permute.xlu0 %1238
        %v1241 = vsel %vm743, %v1235, %v1239
        %v1242 = vmul.f32 %v1241, 0.25
        %v1243 = vmul.f32 %v636, %v1208
        %v1244 = vmul.f32 %v636, %v1212
        %1246 = vrot.lane.b32.xlu0 %v1244, 120
        %v1247 = vpop.permute.xlu0 %1246
        %v1249 = vsub.f32 %v1243, %v1247
        %v1250 = vmul.f32 %v636, %v1221
        %v1251 = vmul.f32 %v636, %v1225
        %1253 = vrot.lane.b32.xlu0 %v1251, 8
        %v1254 = vpop.permute.xlu0 %1253
        %v1256 = vadd.f32 %v1250, %v1254
        %1258 = vrot.lane.b32.xlu0 %v1249, 80
        %v1259 = vpop.permute.xlu0 %1258
        %1262 = vrot.lane.b32.xlu0 %v1256, 80
        %v1263 = vpop.permute.xlu0 %1262
        %v1265 = vsel %vm743, %v1259, %v1263
        %v1266 = vpack.c.bf16 %v1242, %v1242
        %v1267 = vpack.c.bf16 %v1265, %v1265
        %v1269 = vsel %vm763, %v1266, 0
        %v1272 = vsel %vm763, %v1267, 0
        %1274 = vmatprep.subr.bf16.mxu0 0
        %1275 = vmatpush1.bf16.xpose.msra.mxu0 %v1272
        %1276 = vmatprep.subr.bf16.mxu0 0
        %1277 = vmatpush1.bf16.xpose.msra.mxu0 0
        %1278 = vmatprep.subr.bf16.mxu0 0
        %1279 = vmatpush1.bf16.xpose.msra.mxu0 0
        %1280 = vmatprep.subr.bf16.mxu0 0
        %1281 = vmatpush1.bf16.xpose.msra.mxu0 0
        %1282 = vmatprep.subr.bf16.mxu0 0
        %1283 = vmatpush1.bf16.xpose.msra.mxu0 0
        %1284 = vmatprep.subr.bf16.mxu0 0
        %1285 = vmatpush1.bf16.xpose.msra.mxu0 0
        %1286 = vmatprep.subr.bf16.mxu0 0
        %1287 = vmatpush1.bf16.xpose.msra.mxu0 0
        %1288 = vmatprep.subr.bf16.mxu0 0
        %1289 = vmatpush1.bf16.xpose.msra.mxu0 0
        %1290 = vmatprep.subr.bf16.mxu0 0
        %1291 = vmatpush1.bf16.xpose.msra.mxu0 0
        %1292 = vmatprep.subr.bf16.mxu0 0
        %1293 = vmatpush1.bf16.xpose.msra.mxu0 0
        %1294 = vmatprep.subr.bf16.mxu0 0
        %1295 = vmatpush1.bf16.xpose.msra.mxu0 0
        %1296 = vmatprep.subr.bf16.mxu0 0
        %1297 = vmatpush1.bf16.xpose.msra.mxu0 0
        %1298 = vmatprep.subr.bf16.mxu0 0
        %1299 = vmatpush1.bf16.xpose.msra.mxu0 0
        %1300 = vmatprep.subr.bf16.mxu0 0
        %1301 = vmatpush1.bf16.xpose.msra.mxu0 0
        %1302 = vmatprep.subr.bf16.mxu0 0
        %1303 = vmatpush1.bf16.xpose.msra.mxu0 0
        %1304 = vmatprep.subr.bf16.mxu0 0
        %1305 = vmatpush1.bf16.xpose.msra.mxu0 0
        %1306 = vmatprep.mubr.bf16.mxu0 0
        %1307 = vmatmul.mubr.bf16.gmra.mrb[0].mxu0 %v1269
        %v1308 = vpop.f32.mrb[0].mxu0
        %v1309 = vadd.f32 0.0, %v1308
        %v1310 = vpop.f32.mrb[0].mxu0
        %v1311 = vpop.f32.mrb[0].mxu0
        %v1312 = vpop.f32.mrb[0].mxu0
        %1313 = vdwg.mxu0
        %v1314 = vsel %vm720, %v1309, -inf
        %v1315 = vsel %vm743, %v1314, -inf
        %1316 = vmax.xlane.f32.xlu0 %v1315
        %v1317 = vpop.xlane.xlu0 %1316
        %v1318 = vsub.f32 %v1314, %v1317
        %v1319 = vmul.f32 %v1318, 1.442695
        %v1320 = vpow.pop %v1319
        %v1321 = vsel %vm743, %v1320, 0.0
        %1322 = vadd.xlane.f32.xlu0 %v1321
        %v1323 = vpop.xlane.xlu0 %1322
        %v1324 = vrcp.pop %v1323
        %v1325 = vmul.f32 %v1320, %v1324
        %v1326 = vpack.c.bf16 %v1325, %v1325
        %1327 = vrot.lane.b32.xlu0 %v713, 80
        %v1328 = vpop.permute.xlu0 %1327
        %v1330 = vsel %vm743, %v1326, 0
        %v1333 = vsel %vm826, %v1328, 0
        %1335 = vmatprep.subr.bf16.mxu0 0
        %1336 = vmatpush1.bf16.msra.mxu0 %v1333
        %1337 = vmatprep.subr.bf16.mxu0 0
        %1338 = vmatpush1.bf16.msra.mxu0 0
        %1339 = vmatprep.subr.bf16.mxu0 0
        %1340 = vmatpush1.bf16.msra.mxu0 0
        %1341 = vmatprep.subr.bf16.mxu0 0
        %1342 = vmatpush1.bf16.msra.mxu0 0
        %1343 = vmatprep.subr.bf16.mxu0 0
        %1344 = vmatpush1.bf16.msra.mxu0 0
        %1345 = vmatprep.subr.bf16.mxu0 0
        %1346 = vmatpush1.bf16.msra.mxu0 0
        %1347 = vmatprep.subr.bf16.mxu0 0
        %1348 = vmatpush1.bf16.msra.mxu0 0
        %1349 = vmatprep.subr.bf16.mxu0 0
        %1350 = vmatpush1.bf16.msra.mxu0 0
        %1351 = vmatprep.subr.bf16.mxu0 0
        %1352 = vmatpush1.bf16.msra.mxu0 0
        %1353 = vmatprep.subr.bf16.mxu0 0
        %1354 = vmatpush1.bf16.msra.mxu0 0
        %1355 = vmatprep.subr.bf16.mxu0 0
        %1356 = vmatpush1.bf16.msra.mxu0 0
        %1357 = vmatprep.subr.bf16.mxu0 0
        %1358 = vmatpush1.bf16.msra.mxu0 0
        %1359 = vmatprep.subr.bf16.mxu0 0
        %1360 = vmatpush1.bf16.msra.mxu0 0
        %1361 = vmatprep.subr.bf16.mxu0 0
        %1362 = vmatpush1.bf16.msra.mxu0 0
        %1363 = vmatprep.subr.bf16.mxu0 0
        %1364 = vmatpush1.bf16.msra.mxu0 0
        %1365 = vmatprep.subr.bf16.mxu0 0
        %1366 = vmatpush1.bf16.msra.mxu0 0
        %1367 = vmatprep.mubr.bf16.mxu0 0
        %1368 = vmatmul.mubr.bf16.gmra.mrb[0].mxu0 %v1330
        %v1369 = vpop.f32.mrb[0].mxu0
        %v1370 = vadd.f32 0.0, %v1369
        %v1371 = vpop.f32.mrb[0].mxu0
        %v1372 = vpop.f32.mrb[0].mxu0
        %v1373 = vpop.f32.mrb[0].mxu0
        %1374 = vdwg.mxu0
        %1376 = vrot.lane.b32.xlu0 %v1034, 16
        %v1377 = vpop.permute.xlu0 %1376
        %1380 = vrot.lane.b32.xlu0 %v1202, 32
        %v1381 = vpop.permute.xlu0 %1380
        %1384 = vrot.lane.b32.xlu0 %v1370, 48
        %v1385 = vpop.permute.xlu0 %1384
        %v1387 = vsel %vm763, %v865, %v1377
        %vm1388 = vcmask 261120
        %v1389 = vsel %vm1388, %v1387, %v1381
        %vm1390 = vcmask 392192
        %v1391 = vsel %vm1390, %v1389, %v1385
        %v1392 = vpack.c.bf16 %v1391, %v1391
        %v1393 = vld [vmem:[#allocation8] sm:$0xf]
        %v1394 = vld [vmem:[#allocation8 + $0x4] sm:$0xf]
        %v1395 = vld [vmem:[#allocation8 + $0x8] sm:$0xf]
        %v1396 = vld [vmem:[#allocation8 + $0xc] sm:$0xf]
        %v1397 = vld [vmem:[#allocation8 + $0x10] sm:$0xf]
        %v1398 = vld [vmem:[#allocation8 + $0x14] sm:$0xf]
        %v1399 = vld [vmem:[#allocation8 + $0x18] sm:$0xf]
        %v1400 = vld [vmem:[#allocation8 + $0x1c] sm:$0xf]
        %v1409 = vunpack.c.l.b16 %v1393
        %v1410 = vunpack.c.l.b16 %v1394
        %v1411 = vunpack.c.l.b16 %v1395
        %v1412 = vunpack.c.l.b16 %v1396
        %v1413 = vunpack.c.l.b16 %v1397
        %v1414 = vunpack.c.l.b16 %v1398
        %v1415 = vunpack.c.l.b16 %v1399
        %v1416 = vunpack.c.l.b16 %v1400
        %v1417 = vpack.c.b16 %v1410, %v1409
        %v1418 = vpack.c.b16 %v1412, %v1411
        %v1419 = vpack.c.b16 %v1414, %v1413
        %v1420 = vpack.c.b16 %v1416, %v1415
        %v1426 = vsel %vm477, %v1392, 0
        %1428 = vmatprep.subr.bf16.mxu0 0
        %1429 = vmatpush1.bf16.msra.mxu0 %v1417
        %1430 = vmatprep.subr.bf16.mxu0 0
        %1431 = vmatpush1.bf16.msra.mxu0 %v1418
        %1432 = vmatprep.subr.bf16.mxu0 0
        %1433 = vmatpush1.bf16.msra.mxu0 %v1419
        %1434 = vmatprep.subr.bf16.mxu0 0
        %1435 = vmatpush1.bf16.msra.mxu0 %v1420
        %1436 = vmatprep.subr.bf16.mxu0 0
        %1437 = vmatpush1.bf16.msra.mxu0 0
        %1438 = vmatprep.subr.bf16.mxu0 0
        %1439 = vmatpush1.bf16.msra.mxu0 0
        %1440 = vmatprep.subr.bf16.mxu0 0
        %1441 = vmatpush1.bf16.msra.mxu0 0
        %1442 = vmatprep.subr.bf16.mxu0 0
        %1443 = vmatpush1.bf16.msra.mxu0 0
        %1444 = vmatprep.subr.bf16.mxu0 0
        %1445 = vmatpush1.bf16.msra.mxu0 0
        %1446 = vmatprep.subr.bf16.mxu0 0
        %1447 = vmatpush1.bf16.msra.mxu0 0
        %1448 = vmatprep.subr.bf16.mxu0 0
        %1449 = vmatpush1.bf16.msra.mxu0 0
        %1450 = vmatprep.subr.bf16.mxu0 0
        %1451 = vmatpush1.bf16.msra.mxu0 0
        %1452 = vmatprep.subr.bf16.mxu0 0
        %1453 = vmatpush1.bf16.msra.mxu0 0
        %1454 = vmatprep.subr.bf16.mxu0 0
        %1455 = vmatpush1.bf16.msra.mxu0 0
        %1456 = vmatprep.subr.bf16.mxu0 0
        %1457 = vmatpush1.bf16.msra.mxu0 0
        %1458 = vmatprep.subr.bf16.mxu0 0
        %1459 = vmatpush1.bf16.msra.mxu0 0
        %1460 = vmatprep.mubr.bf16.mxu0 0
        %1461 = vmatmul.mubr.bf16.gmra.mrb[0].mxu0 %v1426
        %v1462 = vpop.f32.mrb[0].mxu0
        %v1463 = vadd.f32 0.0, %v1462
        %v1464 = vpop.f32.mrb[0].mxu0
        %v1465 = vpop.f32.mrb[0].mxu0
        %v1466 = vpop.f32.mrb[0].mxu0
        %1467 = vdwg.mxu0
        %v1468 = vadd.f32 %v474, %v1463
        %v1469 = vld [vmem:[%s9] sm:$0x1]
        %v1470 = vmul.f32 %v1468, %v1468
        %v1471 = vsel %vm477, %v1470, 0.0
        %1472 = vadd.xlane.f32.xlu0 %v1471
        %v1473 = vpop.xlane.xlu0 %1472
        %v1474 = vmul.f32 %v1473, %v481
        %v1475 = vadd.f32 %v1474, 1e-05
        %v1476 = vrsqrt.pop %v1475
        %v1478 = vlaneseq
        %v1479 = vshrl.u32 %v1478, 7
        %v1480 = vsub.s32 0, %v1479
        %v1481 = vrot.slane %v1469, %v1480
        %v1483 = vmul.f32 %v1476, %v1481
        %v1484 = vmul.f32 %v1468, %v1483
        %v1485 = vpack.c.bf16 %v1484, %v1484
        %v1486 = vld [vmem:[%s5] sm:$0xff]
        %v1487 = vld [vmem:[%s5 + $0x8] sm:$0xff]
        %v1488 = vld [vmem:[%s5 + $0x10] sm:$0xff]
        %v1489 = vld [vmem:[%s5 + $0x18] sm:$0xff]
        %v1490 = vld [vmem:[%s5 + $0x20] sm:$0xff]
        %v1491 = vld [vmem:[%s5 + $0x28] sm:$0xff]
        %v1492 = vld [vmem:[%s5 + $0x30] sm:$0xff]
        %v1493 = vld [vmem:[%s5 + $0x38] sm:$0xff]
        %v1502 = vunpack.c.l.b16 %v1486
        %v1503 = vunpack.c.h.b16 %v1486
        %v1504 = vunpack.c.l.b16 %v1487
        %v1505 = vunpack.c.h.b16 %v1487
        %v1506 = vunpack.c.l.b16 %v1488
        %v1507 = vunpack.c.h.b16 %v1488
        %v1508 = vunpack.c.l.b16 %v1489
        %v1509 = vunpack.c.h.b16 %v1489
        %v1510 = vunpack.c.l.b16 %v1490
        %v1511 = vunpack.c.h.b16 %v1490
        %v1512 = vunpack.c.l.b16 %v1491
        %v1513 = vunpack.c.h.b16 %v1491
        %v1514 = vunpack.c.l.b16 %v1492
        %v1515 = vunpack.c.h.b16 %v1492
        %v1516 = vunpack.c.l.b16 %v1493
        %v1517 = vunpack.c.h.b16 %v1493
        %v1518 = vpack.c.b16 %v1504, %v1502
        %v1519 = vpack.c.b16 %v1505, %v1503
        %v1520 = vpack.c.b16 %v1508, %v1506
        %v1521 = vpack.c.b16 %v1509, %v1507
        %v1522 = vpack.c.b16 %v1512, %v1510
        %v1523 = vpack.c.b16 %v1513, %v1511
        %v1524 = vpack.c.b16 %v1516, %v1514
        %v1525 = vpack.c.b16 %v1517, %v1515
        %v1535 = vsel %vm477, %v1485, 0
        %1537 = vmatprep.subr.bf16.mxu0 %v1519
        %1538 = vmatpush1.bf16.msra.mxu0 %v1518
        %1539 = vmatprep.subr.bf16.mxu0 %v1521
        %1540 = vmatpush1.bf16.msra.mxu0 %v1520
        %1541 = vmatprep.subr.bf16.mxu0 %v1523
        %1542 = vmatpush1.bf16.msra.mxu0 %v1522
        %1543 = vmatprep.subr.bf16.mxu0 %v1525
        %1544 = vmatpush1.bf16.msra.mxu0 %v1524
        %1545 = vmatprep.subr.bf16.mxu0 0
        %1546 = vmatpush1.bf16.msra.mxu0 0
        %1547 = vmatprep.subr.bf16.mxu0 0
        %1548 = vmatpush1.bf16.msra.mxu0 0
        %1549 = vmatprep.subr.bf16.mxu0 0
        %1550 = vmatpush1.bf16.msra.mxu0 0
        %1551 = vmatprep.subr.bf16.mxu0 0
        %1552 = vmatpush1.bf16.msra.mxu0 0
        %1553 = vmatprep.subr.bf16.mxu0 0
        %1554 = vmatpush1.bf16.msra.mxu0 0
        %1555 = vmatprep.subr.bf16.mxu0 0
        %1556 = vmatpush1.bf16.msra.mxu0 0
        %1557 = vmatprep.subr.bf16.mxu0 0
        %1558 = vmatpush1.bf16.msra.mxu0 0
        %1559 = vmatprep.subr.bf16.mxu0 0
        %1560 = vmatpush1.bf16.msra.mxu0 0
        %1561 = vmatprep.subr.bf16.mxu0 0
        %1562 = vmatpush1.bf16.msra.mxu0 0
        %1563 = vmatprep.subr.bf16.mxu0 0
        %1564 = vmatpush1.bf16.msra.mxu0 0
        %1565 = vmatprep.subr.bf16.mxu0 0
        %1566 = vmatpush1.bf16.msra.mxu0 0
        %1567 = vmatprep.subr.bf16.mxu0 0
        %1568 = vmatpush1.bf16.msra.mxu0 0
        %1569 = vmatprep.mubr.bf16.mxu0 0
        %1570 = vmatmul.mubr.bf16.gmra.mrb[0].mxu0 %v1535
        %v1571 = vpop.f32.mrb[0].mxu0
        %v1572 = vadd.f32 0.0, %v1571
        %v1573 = vpop.f32.mrb[0].mxu0
        %v1574 = vadd.f32 0.0, %v1573
        %v1575 = vpop.f32.mrb[0].mxu0
        %v1576 = vpop.f32.mrb[0].mxu0
        %1577 = vdwg.mxu0
        %v1578 = vld [vmem:[%s7] sm:$0xff]
        %v1579 = vld [vmem:[%s7 + $0x8] sm:$0xff]
        %v1580 = vld [vmem:[%s7 + $0x10] sm:$0xff]
        %v1581 = vld [vmem:[%s7 + $0x18] sm:$0xff]
        %v1582 = vld [vmem:[%s7 + $0x20] sm:$0xff]
        %v1583 = vld [vmem:[%s7 + $0x28] sm:$0xff]
        %v1584 = vld [vmem:[%s7 + $0x30] sm:$0xff]
        %v1585 = vld [vmem:[%s7 + $0x38] sm:$0xff]
        %v1594 = vunpack.c.l.b16 %v1578
        %v1595 = vunpack.c.h.b16 %v1578
        %v1596 = vunpack.c.l.b16 %v1579
        %v1597 = vunpack.c.h.b16 %v1579
        %v1598 = vunpack.c.l.b16 %v1580
        %v1599 = vunpack.c.h.b16 %v1580
        %v1600 = vunpack.c.l.b16 %v1581
        %v1601 = vunpack.c.h.b16 %v1581
        %v1602 = vunpack.c.l.b16 %v1582
        %v1603 = vunpack.c.h.b16 %v1582
        %v1604 = vunpack.c.l.b16 %v1583
        %v1605 = vunpack.c.h.b16 %v1583
        %v1606 = vunpack.c.l.b16 %v1584
        %v1607 = vunpack.c.h.b16 %v1584
        %v1608 = vunpack.c.l.b16 %v1585
        %v1609 = vunpack.c.h.b16 %v1585
        %v1610 = vpack.c.b16 %v1596, %v1594
        %v1611 = vpack.c.b16 %v1597, %v1595
        %v1612 = vpack.c.b16 %v1600, %v1598
        %v1613 = vpack.c.b16 %v1601, %v1599
        %v1614 = vpack.c.b16 %v1604, %v1602
        %v1615 = vpack.c.b16 %v1605, %v1603
        %v1616 = vpack.c.b16 %v1608, %v1606
        %v1617 = vpack.c.b16 %v1609, %v1607
        %1626 = vmatprep.subr.bf16.mxu0 %v1611
        %1627 = vmatpush1.bf16.msra.mxu0 %v1610
        %1628 = vmatprep.subr.bf16.mxu0 %v1613
        %1629 = vmatpush1.bf16.msra.mxu0 %v1612
        %1630 = vmatprep.subr.bf16.mxu0 %v1615
        %1631 = vmatpush1.bf16.msra.mxu0 %v1614
        %1632 = vmatprep.subr.bf16.mxu0 %v1617
        %1633 = vmatpush1.bf16.msra.mxu0 %v1616
        %1634 = vmatprep.subr.bf16.mxu0 0
        %1635 = vmatpush1.bf16.msra.mxu0 0
        %1636 = vmatprep.subr.bf16.mxu0 0
        %1637 = vmatpush1.bf16.msra.mxu0 0
        %1638 = vmatprep.subr.bf16.mxu0 0
        %1639 = vmatpush1.bf16.msra.mxu0 0
        %1640 = vmatprep.subr.bf16.mxu0 0
        %1641 = vmatpush1.bf16.msra.mxu0 0
        %1642 = vmatprep.subr.bf16.mxu0 0
        %1643 = vmatpush1.bf16.msra.mxu0 0
        %1644 = vmatprep.subr.bf16.mxu0 0
        %1645 = vmatpush1.bf16.msra.mxu0 0
        %1646 = vmatprep.subr.bf16.mxu0 0
        %1647 = vmatpush1.bf16.msra.mxu0 0
        %1648 = vmatprep.subr.bf16.mxu0 0
        %1649 = vmatpush1.bf16.msra.mxu0 0
        %1650 = vmatprep.subr.bf16.mxu0 0
        %1651 = vmatpush1.bf16.msra.mxu0 0
        %1652 = vmatprep.subr.bf16.mxu0 0
        %1653 = vmatpush1.bf16.msra.mxu0 0
        %1654 = vmatprep.subr.bf16.mxu0 0
        %1655 = vmatpush1.bf16.msra.mxu0 0
        %1656 = vmatprep.subr.bf16.mxu0 0
        %1657 = vmatpush1.bf16.msra.mxu0 0
        %1658 = vmatprep.mubr.bf16.mxu0 0
        %1659 = vmatmul.mubr.bf16.gmra.mrb[0].mxu0 %v1535
        %v1660 = vpop.f32.mrb[0].mxu0
        %v1661 = vadd.f32 0.0, %v1660
        %v1662 = vpop.f32.mrb[0].mxu0
        %v1663 = vadd.f32 0.0, %v1662
        %v1664 = vpop.f32.mrb[0].mxu0
        %v1665 = vpop.f32.mrb[0].mxu0
        %1666 = vdwg.mxu0
        %v1667 = vxor.u32 %v1572, 2147483648
        %v1668 = vxor.u32 %v1574, 2147483648
        %v1669 = vmul.f32 %v1667, 1.442695
        %v1670 = vpow.pop %v1669
        %v1671 = vmul.f32 %v1668, 1.442695
        %v1672 = vpow.pop %v1671
        %v1673 = vadd.f32 %v1670, 1.0
        %v1674 = vadd.f32 %v1672, 1.0
        %v1675 = vrcp.pop %v1673
        %v1676 = vmul.f32 1.0, %v1675
        %v1677 = vrcp.pop %v1674
        %v1678 = vmul.f32 1.0, %v1677
        %v1679 = vmul.f32 %v1572, %v1676
        %v1680 = vmul.f32 %v1574, %v1678
        %v1681 = vmul.f32 %v1679, %v1661
        %v1682 = vmul.f32 %v1680, %v1663
        %v1683 = vpack.c.bf16 %v1681, %v1681
        %v1684 = vpack.c.bf16 %v1682, %v1682
        %v1685 = vld [vmem:[%s6] sm:$0xf]
        %v1686 = vld [vmem:[%s6 + $0x4] sm:$0xf]
        %v1687 = vld [vmem:[%s6 + $0x8] sm:$0xf]
        %v1688 = vld [vmem:[%s6 + $0xc] sm:$0xf]
        %v1689 = vld [vmem:[%s6 + $0x10] sm:$0xf]
        %v1690 = vld [vmem:[%s6 + $0x14] sm:$0xf]
        %v1691 = vld [vmem:[%s6 + $0x18] sm:$0xf]
        %v1692 = vld [vmem:[%s6 + $0x1c] sm:$0xf]
        %v1693 = vld [vmem:[%s6 + $0x20] sm:$0xf]
        %v1694 = vld [vmem:[%s6 + $0x24] sm:$0xf]
        %v1695 = vld [vmem:[%s6 + $0x28] sm:$0xf]
        %v1696 = vld [vmem:[%s6 + $0x2c] sm:$0xf]
        %v1697 = vld [vmem:[%s6 + $0x30] sm:$0xf]
        %v1698 = vld [vmem:[%s6 + $0x34] sm:$0xf]
        %v1699 = vld [vmem:[%s6 + $0x38] sm:$0xf]
        %v1700 = vld [vmem:[%s6 + $0x3c] sm:$0xf]
        %v1701 = vld [vmem:[%s6 + $0x40] sm:$0xf]
        %v1702 = vld [vmem:[%s6 + $0x44] sm:$0xf]
        %v1703 = vld [vmem:[%s6 + $0x48] sm:$0xf]
        %v1704 = vld [vmem:[%s6 + $0x4c] sm:$0xf]
        %v1705 = vld [vmem:[%s6 + $0x50] sm:$0xf]
        %v1706 = vld [vmem:[%s6 + $0x54] sm:$0xf]
        %v1707 = vld [vmem:[%s6 + $0x58] sm:$0xf]
        %v1708 = vld [vmem:[%s6 + $0x5c] sm:$0xf]
        %v1733 = vunpack.c.l.b16 %v1685
        %v1734 = vunpack.c.l.b16 %v1686
        %v1735 = vunpack.c.l.b16 %v1687
        %v1736 = vunpack.c.l.b16 %v1688
        %v1737 = vunpack.c.l.b16 %v1689
        %v1738 = vunpack.c.l.b16 %v1690
        %v1739 = vunpack.c.l.b16 %v1691
        %v1740 = vunpack.c.l.b16 %v1692
        %v1741 = vunpack.c.l.b16 %v1693
        %v1742 = vunpack.c.l.b16 %v1694
        %v1743 = vunpack.c.l.b16 %v1695
        %v1744 = vunpack.c.l.b16 %v1696
        %v1745 = vunpack.c.l.b16 %v1697
        %v1746 = vunpack.c.l.b16 %v1698
        %v1747 = vunpack.c.l.b16 %v1699
        %v1748 = vunpack.c.l.b16 %v1700
        %v1749 = vunpack.c.l.b16 %v1701
        %v1750 = vunpack.c.l.b16 %v1702
        %v1751 = vunpack.c.l.b16 %v1703
        %v1752 = vunpack.c.l.b16 %v1704
        %v1753 = vunpack.c.l.b16 %v1705
        %v1754 = vunpack.c.l.b16 %v1706
        %v1755 = vunpack.c.l.b16 %v1707
        %v1756 = vunpack.c.l.b16 %v1708
        %v1757 = vpack.c.b16 %v1734, %v1733
        %v1758 = vpack.c.b16 %v1736, %v1735
        %v1759 = vpack.c.b16 %v1738, %v1737
        %v1760 = vpack.c.b16 %v1740, %v1739
        %v1761 = vpack.c.b16 %v1742, %v1741
        %v1762 = vpack.c.b16 %v1744, %v1743
        %v1763 = vpack.c.b16 %v1746, %v1745
        %v1764 = vpack.c.b16 %v1748, %v1747
        %v1765 = vpack.c.b16 %v1750, %v1749
        %v1766 = vpack.c.b16 %v1752, %v1751
        %v1767 = vpack.c.b16 %v1754, %v1753
        %v1768 = vpack.c.b16 %v1756, %v1755
        %v1782 = vsel %vm477, %v1684, 0
        %1784 = vmatprep.subr.bf16.mxu0 0
        %1785 = vmatpush1.bf16.msra.mxu0 %v1757
        %1786 = vmatprep.subr.bf16.mxu0 0
        %1787 = vmatpush1.bf16.msra.mxu0 %v1758
        %1788 = vmatprep.subr.bf16.mxu0 0
        %1789 = vmatpush1.bf16.msra.mxu0 %v1759
        %1790 = vmatprep.subr.bf16.mxu0 0
        %1791 = vmatpush1.bf16.msra.mxu0 %v1760
        %1792 = vmatprep.subr.bf16.mxu0 0
        %1793 = vmatpush1.bf16.msra.mxu0 %v1761
        %1794 = vmatprep.subr.bf16.mxu0 0
        %1795 = vmatpush1.bf16.msra.mxu0 %v1762
        %1796 = vmatprep.subr.bf16.mxu0 0
        %1797 = vmatpush1.bf16.msra.mxu0 %v1763
        %1798 = vmatprep.subr.bf16.mxu0 0
        %1799 = vmatpush1.bf16.msra.mxu0 %v1764
        %1800 = vmatprep.subr.bf16.mxu0 0
        %1801 = vmatpush1.bf16.msra.mxu0 %v1765
        %1802 = vmatprep.subr.bf16.mxu0 0
        %1803 = vmatpush1.bf16.msra.mxu0 %v1766
        %1804 = vmatprep.subr.bf16.mxu0 0
        %1805 = vmatpush1.bf16.msra.mxu0 %v1767
        %1806 = vmatprep.subr.bf16.mxu0 0
        %1807 = vmatpush1.bf16.msra.mxu0 %v1768
        %1808 = vmatprep.subr.bf16.mxu0 0
        %1809 = vmatpush1.bf16.msra.mxu0 0
        %1810 = vmatprep.subr.bf16.mxu0 0
        %1811 = vmatpush1.bf16.msra.mxu0 0
        %1812 = vmatprep.subr.bf16.mxu0 0
        %1813 = vmatpush1.bf16.msra.mxu0 0
        %1814 = vmatprep.subr.bf16.mxu0 0
        %1815 = vmatpush1.bf16.msra.mxu0 0
        %1816 = vmatprep.mubr.bf16.mxu0 %v1782
        %1817 = vmatmul.mubr.bf16.gmra.mrb[0].mxu0 %v1683
        %v1818 = vpop.f32.mrb[0].mxu0
        %v1819 = vadd.f32 0.0, %v1818
        %v1820 = vpop.f32.mrb[0].mxu0
        %v1821 = vpop.f32.mrb[0].mxu0
        %v1822 = vpop.f32.mrb[0].mxu0
        %1823 = vdwg.mxu0
        %v1824 = vadd.f32 %v1468, %v1819
        %1825 = vst.msk [vmem:[%s472] sm:$0xff] %vm477, %v1824
        %s1826 = sand.u32 %s296, 1
        %s1827 = scalar_lea.sflag [#allocation4], %s1826
        %s1828 = sand.u32 %s296, 1
        %s1829 = smul.addr %s1828, 8
        %s1830 = scalar_lea.vmem [#allocation10], %s1829
        // Predicated region
        $region85: #{tpu_custom_call.1} parent=67 // pred_check
          %p1831 = pneg %p306
        $region86: #{tpu_custom_call.1} parent=67 // pred_check_branch
          %1833 = sbr.rel (%p1831) target = $region88
        $region87: #{tpu_custom_call.1} parent=67 // pred_region
          %s1835 = ssub.s32 128, 128
          %1836 = vsyncadd %s1827, %s1835
          %s1837 = smul.addr %s31, 128
          %s1838 = scalar_lea.hbm %s12, %s1837
          %s1840 = sshll.u32 %s1830, 4
          %s1841 = int_to_ptr.vmem [resolvable:$true] %s1840
          %1843 = dma.vmem_to_hbm [thread:$0]  %s1841, 128, %s1838, %s1827
        $region88: #{tpu_custom_call.1} parent=67 // pred_fallthru
          _
      $region68: #{tpu_custom_call.1} parent=5 // pred_fallthru
        _
      %p1844 = scmp.le.s32.totalorder 2, %s26
      // Predicated region
      $region89: #{tpu_custom_call.1} parent=5 // pred_check
        %p1845 = pneg %p1844
      $region90: #{tpu_custom_call.1} parent=5 // pred_check_branch
        %1847 = sbr.rel (%p1845) target = $region92
      $region91: #{tpu_custom_call.1} parent=5 // pred_region
        %s1848 = ssub.s32 %s26, 2
        // Predicated region
        $region93: #{tpu_custom_call.1} parent=91 // pred_check
          %p1849 = pneg %p312
        $region94: #{tpu_custom_call.1} parent=91 // pred_check_branch
          %1851 = sbr.rel (%p1849) target = $region96
        $region95: #{tpu_custom_call.1} parent=91 // pred_region
          %s1852 = sand.u32 %s297, 1
          %s1853 = scalar_lea.sflag [#allocation4], %s1852
          %s1854 = sand.u32 %s297, 1
          %s1855 = smul.addr %s1854, 8
          %s1856 = scalar_lea.vmem [#allocation10], %s1855
          %1857 = dma.done %s1853, 128
        $region96: #{tpu_custom_call.1} parent=91 // pred_fallthru
          _
      $region92: #{tpu_custom_call.1} parent=5 // pred_fallthru
        _
    $region6: #{tpu_custom_call.1} parent=1 // loop_footer
      %s30 = sadd.s32 1, %s26
    $region7: #{tpu_custom_call.1} parent=1 // loop_footer_branch
      %25 = sbr.rel target = $region3
    $region8: #{tpu_custom_call.1} parent=1 // loop_exit
      _
    %1858 = vsyncpa [#allocation3], 1
    %s1859 = scalar_lea.sflag [#allocation3], 1
    %1860 = vsyncpa %s1859, 1
    %1861 = vsyncpa [#allocation6], 1
    %1862 = vsyncpa [#allocation9], 1
    %1863 = vsyncpa [#allocation4], 1
    %s1864 = scalar_lea.sflag [#allocation4], 1
    %1865 = vsyncpa %s1864, 1

</llo_original>
